<compile_context>
chip_gen: v5e
topology: v5e:2x2
jax: 0.10.0
libtpu: 0.0.40
codegen_flags: <defaults>
</compile_context>

<pallas_src>
import jax
import jax.numpy as jnp
from jax.experimental import pallas as pl
from jax.experimental.pallas import tpu as pltpu

IN_FEATURES = 784
HIDDEN = 256


def _leaky_relu(x, slope=0.2):
    return jnp.where(x > 0, x, slope * x)


def _round_up(x, m):
    return ((x + m - 1) // m) * m


def discriminator_kernel(x_ref, w1_ref, b1_ref, w2_ref, b2_ref, w3_ref, b3_ref, o_ref):
    # No-op if the producer already streams bf16; keeps MXU at bf16 rate otherwise.
    x = x_ref[...].astype(jnp.bfloat16)                                # (TM, 784)

    h1 = jnp.dot(x, w1_ref[...], preferred_element_type=jnp.float32)  # (TM, 256) f32
    h1 = _leaky_relu(h1 + b1_ref[...])

    h2 = jnp.dot(h1.astype(jnp.bfloat16), w2_ref[...],
                 preferred_element_type=jnp.float32)                   # (TM, 256) f32
    h2 = _leaky_relu(h2 + b2_ref[...])

    # Layer 3 (256 -> 1): VPU elementwise multiply + XLU lane reduce; frees the MXU
    # and avoids a lane-sparse N=1 matmul result.
    out = jnp.sum(h2 * w3_ref[...], axis=-1, keepdims=True) + b3_ref[...]  # (TM, 1)
    o_ref[...] = out.astype(o_ref.dtype)


def discriminator_forward(x, params, *, tm=2048):
    """x: (B, 784), ideally bf16 from the producer (f32 also accepted).
    Returns (B, 1) f32."""
    w1, b1, w2, b2, w3, b3 = params
    B, F = x.shape
    assert F == IN_FEATURES, F

    # ---- batch tile --------------------------------------------------------
    B8 = _round_up(B, 8)
    # Keep >= 4 grid steps for large batches so v7x's 2 TensorCores each get
    # >= 2 pipelined iterations (harmless on single-TC v5e/v6e).
    tm_cap = max(256, _round_up(pl.cdiv(B, 4), 256))
    TM = min(int(tm), tm_cap, B8)
    TM = max(8, (TM // 8) * 8)          # enforce sublane (multiple-of-8) alignment
    grid = (pl.cdiv(B, TM),)

    # bf16 weights for the two MXU layers; biases and the tiny layer-3 row stay f32.
    w1b = w1.astype(jnp.bfloat16)
    w2b = w2.astype(jnp.bfloat16)

    # ---- VMEM budget: double-buffered x/out + resident weights + f32 temps --
    x_bytes = 2 * TM * IN_FEATURES * x.dtype.itemsize
    out_bytes = 2 * TM * 4
    w_bytes = (w1b.size + w2b.size) * 2 + (b1.size + b2.size + w3.size + b3.size) * 4
    h_bytes = 4 * TM * HIDDEN * 4
    vmem_limit = int(min(56 * 1024 * 1024,                 # stay under v7x 64 MiB
                         max(32 * 1024 * 1024,
                             1.5 * (x_bytes + out_bytes + w_bytes + h_bytes))))

    flops = 2 * B * (IN_FEATURES * HIDDEN + HIDDEN * HIDDEN + HIDDEN)
    bytes_accessed = (B * IN_FEATURES * x.dtype.itemsize + B * 4   # x in, out
                      + w1b.size * 2 + w2b.size * 2                # bf16 weights
                      + (b1.size + b2.size + w3.size + b3.size) * 4)

    def build(single_buffer_consts):
        if single_buffer_consts:
            # Constant-index blocks are fetched once; single-buffer them to
            # reclaim the pointless second buffer (~0.5-0.9 MiB of VMEM).
            def const_spec(shape):
                return pl.BlockSpec(shape, lambda i: (0, 0),
                                    pipeline_mode=pl.Buffered(1))
        else:
            def const_spec(shape):
                return pl.BlockSpec(shape, lambda i: (0, 0))

        return pl.pallas_call(
            discriminator_kernel,
            out_shape=jax.ShapeDtypeStruct((B, 1), jnp.float32),
            grid=grid,
            in_specs=[
                pl.BlockSpec((TM, IN_FEATURES), lambda i: (i, 0)),   # pipelined x tile
                const_spec(w1b.shape), const_spec(b1.shape),         # resident weights
                const_spec(w2b.shape), const_spec(b2.shape),
                const_spec(w3.shape), const_spec(b3.shape),
            ],
            out_specs=pl.BlockSpec((TM, 1), lambda i: (i, 0)),
            compiler_params=pltpu.CompilerParams(
                dimension_semantics=("parallel",),
                vmem_limit_bytes=vmem_limit,
            ),
            cost_estimate=pl.CostEstimate(
                flops=flops, transcendentals=0, bytes_accessed=bytes_accessed),
        )

    args = (x, w1b, b1, w2b, b2, w3, b3)
    try:
        return build(True)(*args)
    except Exception:
        # Fallback for environments where single-buffered pipeline_mode is
        # unsupported; identical semantics, just default double-buffering.
        return build(False)(*args)


def init_params(key):
    """Deterministic init mimicking PyTorch nn.Linear default (uniform +-1/sqrt(fan_in)).

    Layer-1/2 weights stored as (in_features, out_features); the layer-3 weight
    is stored as a row (1, 256) for the in-kernel VPU reduce."""
    def linear(key, fan_in, fan_out):
        kw, kb = jax.random.split(key)
        bound = 1.0 / jnp.sqrt(fan_in)
        w = jax.random.uniform(kw, (fan_in, fan_out), jnp.float32, -bound, bound)
        b = jax.random.uniform(kb, (1, fan_out), jnp.float32, -bound, bound)
        return w, b

    k1, k2, k3 = jax.random.split(key, 3)
    w1, b1 = linear(k1, IN_FEATURES, HIDDEN)
    w2, b2 = linear(k2, HIDDEN, HIDDEN)
    w3_t, b3 = linear(k3, HIDDEN, 1)
    w3 = w3_t.T              # (1, 256) row for broadcast-multiply + reduce
    b3 = b3.reshape(1, 1)
    return (w1, b1, w2, b2, w3, b3)


def reference_forward(x, params):
    """Pure-JAX f32 reference matching the PyTorch module semantics."""
    w1, b1, w2, b2, w3, b3 = params
    h = _leaky_relu(x @ w1 + b1)
    h = _leaky_relu(h @ w2 + b2)
    return h @ w3.T + b3


if __name__ == "__main__":
    key = jax.random.PRNGKey(0)
    k_x, k_p = jax.random.split(key)

    B = 64
    # Producer emits bf16 so the dominant x HBM stream is half-width.
    x = jax.random.normal(k_x, (B, IN_FEATURES), jnp.bfloat16)
    params = init_params(k_p)

    # tm=32 -> 2 grid steps so the batch-tiled pipeline is exercised even at B=64.
    out = discriminator_forward(x, params, tm=32)
    out = jax.block_until_ready(out)

    ref = reference_forward(x.astype(jnp.float32), params)
    assert out.shape == (B, 1), out.shape
    # Tolerance accounts for bf16 matmul inputs (f32 accumulation) vs f32 reference.
    assert jnp.allclose(out, ref, atol=5e-2, rtol=5e-2), (
        float(jnp.max(jnp.abs(out - ref))), out[:4], ref[:4])

    print("KERNEL_OK")
</pallas_src>

<mosaic_0001>
module attributes {stable_mosaic.version = 11 : i64} {
  func.func @discriminator_kernel(%arg0: i32, %arg1: memref<32x784xbf16, #tpu.memory_space<vmem>>, %arg2: memref<784x256xbf16, #tpu.memory_space<vmem>>, %arg3: memref<1x256xf32, #tpu.memory_space<vmem>>, %arg4: memref<256x256xbf16, #tpu.memory_space<vmem>>, %arg5: memref<1x256xf32, #tpu.memory_space<vmem>>, %arg6: memref<1x256xf32, #tpu.memory_space<vmem>>, %arg7: memref<1x1xf32, #tpu.memory_space<vmem>>, %arg8: memref<32x1xf32, #tpu.memory_space<vmem>>) attributes {dimension_semantics = [#tpu.dimension_semantics<parallel>], iteration_bounds = array<i64: 2>, scalar_prefetch = 0 : i64, scratch_operands = 0 : i64, tpu.core_type = #tpu.core_type<tc>, window_params = [{transform_indices = @transform_0, window_bounds = array<i64: 32, 784>}, {pipeline_mode = #tpu.pipeline_mode<synchronous>, transform_indices = @transform_1, window_bounds = array<i64: 784, 256>}, {pipeline_mode = #tpu.pipeline_mode<synchronous>, transform_indices = @transform_2, window_bounds = array<i64: 1, 256>}, {pipeline_mode = #tpu.pipeline_mode<synchronous>, transform_indices = @transform_3, window_bounds = array<i64: 256, 256>}, {pipeline_mode = #tpu.pipeline_mode<synchronous>, transform_indices = @transform_4, window_bounds = array<i64: 1, 256>}, {pipeline_mode = #tpu.pipeline_mode<synchronous>, transform_indices = @transform_5, window_bounds = array<i64: 1, 256>}, {pipeline_mode = #tpu.pipeline_mode<synchronous>, transform_indices = @transform_6, window_bounds = array<i64: 1, 1>}, {transform_indices = @transform_7, window_bounds = array<i64: 32, 1>}]} {
    %c0 = arith.constant 0 : index
    %c0_0 = arith.constant 0 : index
    %0 = vector.load %arg1[%c0, %c0_0] : memref<32x784xbf16, #tpu.memory_space<vmem>>, vector<32x784xbf16>
    %c0_1 = arith.constant 0 : index
    %c0_2 = arith.constant 0 : index
    %1 = vector.load %arg2[%c0_1, %c0_2] : memref<784x256xbf16, #tpu.memory_space<vmem>>, vector<784x256xbf16>
    %cst = arith.constant dense<0.000000e+00> : vector<32x256xf32>
    %2 = tpu.matmul %0, %1, %cst {dimension_numbers = #tpu.dot_dimension_numbers<[1], [0], [0], [1], [0, 0, 1, 1], [], []>} : vector<32x784xbf16>, vector<784x256xbf16>, vector<32x256xf32> -> vector<32x256xf32>
    %c0_3 = arith.constant 0 : index
    %c0_4 = arith.constant 0 : index
    %3 = vector.load %arg3[%c0_3, %c0_4] : memref<1x256xf32, #tpu.memory_space<vmem>>, vector<1x256xf32>
    %4 = vector.broadcast %3 : vector<1x256xf32> to vector<32x256xf32>
    %5 = arith.addf %2, %4 : vector<32x256xf32>
    %cst_5 = arith.constant 0.000000e+00 : f32
    %6 = vector.broadcast %cst_5 : f32 to vector<32x256xf32>
    %7 = arith.cmpf ogt, %5, %6 : vector<32x256xf32>
    %cst_6 = arith.constant 2.000000e-01 : f32
    %8 = vector.broadcast %cst_6 : f32 to vector<32x256xf32>
    %9 = arith.mulf %8, %5 : vector<32x256xf32>
    %10 = arith.select %7, %5, %9 : vector<32x256xi1>, vector<32x256xf32>
    %11 = arith.truncf %10 : vector<32x256xf32> to vector<32x256xbf16>
    %c0_7 = arith.constant 0 : index
    %c0_8 = arith.constant 0 : index
    %12 = vector.load %arg4[%c0_7, %c0_8] : memref<256x256xbf16, #tpu.memory_space<vmem>>, vector<256x256xbf16>
    %cst_9 = arith.constant dense<0.000000e+00> : vector<32x256xf32>
    %13 = tpu.matmul %11, %12, %cst_9 {dimension_numbers = #tpu.dot_dimension_numbers<[1], [0], [0], [1], [0, 0, 1, 1], [], []>} : vector<32x256xbf16>, vector<256x256xbf16>, vector<32x256xf32> -> vector<32x256xf32>
    %c0_10 = arith.constant 0 : index
    %c0_11 = arith.constant 0 : index
    %14 = vector.load %arg5[%c0_10, %c0_11] : memref<1x256xf32, #tpu.memory_space<vmem>>, vector<1x256xf32>
    %15 = vector.broadcast %14 : vector<1x256xf32> to vector<32x256xf32>
    %16 = arith.addf %13, %15 : vector<32x256xf32>
    %cst_12 = arith.constant 0.000000e+00 : f32
    %17 = vector.broadcast %cst_12 : f32 to vector<32x256xf32>
    %18 = arith.cmpf ogt, %16, %17 : vector<32x256xf32>
    %cst_13 = arith.constant 2.000000e-01 : f32
    %19 = vector.broadcast %cst_13 : f32 to vector<32x256xf32>
    %20 = arith.mulf %19, %16 : vector<32x256xf32>
    %21 = arith.select %18, %16, %20 : vector<32x256xi1>, vector<32x256xf32>
    %c0_14 = arith.constant 0 : index
    %c0_15 = arith.constant 0 : index
    %22 = vector.load %arg6[%c0_14, %c0_15] : memref<1x256xf32, #tpu.memory_space<vmem>>, vector<1x256xf32>
    %23 = vector.broadcast %22 : vector<1x256xf32> to vector<32x256xf32>
    %24 = arith.mulf %21, %23 : vector<32x256xf32>
    %cst_16 = arith.constant dense<0.000000e+00> : vector<32xf32>
    %25 = vector.multi_reduction <add>, %24, %cst_16 [1] : vector<32x256xf32> to vector<32xf32>
    %26 = vector.shape_cast %25 : vector<32xf32> to vector<32x1xf32>
    %c0_17 = arith.constant 0 : index
    %c0_18 = arith.constant 0 : index
    %27 = vector.load %arg7[%c0_17, %c0_18] : memref<1x1xf32, #tpu.memory_space<vmem>>, vector<1x1xf32>
    %28 = vector.broadcast %27 : vector<1x1xf32> to vector<32x1xf32>
    %29 = arith.addf %26, %28 : vector<32x1xf32>
    %c0_19 = arith.constant 0 : index
    %c0_20 = arith.constant 0 : index
    %30 = vector.load %arg8[%c0_19, %c0_20] : memref<32x1xf32, #tpu.memory_space<vmem>>, vector<32x1xf32>
    tpu.vector_store %arg8[%c0_19, %c0_20], %29 {strides = array<i32>} : memref<32x1xf32, #tpu.memory_space<vmem>>, vector<32x1xf32>,
    return
  }
  func.func @transform_0(%arg0: i32) -> (i32, i32) {
    %c0_i32 = arith.constant 0 : i32
    %c0_i32_0 = arith.constant 0 : i32
    return %arg0, %c0_i32 : i32, i32
  }
  func.func @transform_1(%arg0: i32) -> (i32, i32) {
    %c0_i32 = arith.constant 0 : i32
    %c0_i32_0 = arith.constant 0 : i32
    %c0_i32_1 = arith.constant 0 : i32
    return %c0_i32, %c0_i32_0 : i32, i32
  }
  func.func @transform_2(%arg0: i32) -> (i32, i32) {
    %c0_i32 = arith.constant 0 : i32
    %c0_i32_0 = arith.constant 0 : i32
    %c0_i32_1 = arith.constant 0 : i32
    return %c0_i32, %c0_i32_0 : i32, i32
  }
  func.func @transform_3(%arg0: i32) -> (i32, i32) {
    %c0_i32 = arith.constant 0 : i32
    %c0_i32_0 = arith.constant 0 : i32
    %c0_i32_1 = arith.constant 0 : i32
    return %c0_i32, %c0_i32_0 : i32, i32
  }
  func.func @transform_4(%arg0: i32) -> (i32, i32) {
    %c0_i32 = arith.constant 0 : i32
    %c0_i32_0 = arith.constant 0 : i32
    %c0_i32_1 = arith.constant 0 : i32
    return %c0_i32, %c0_i32_0 : i32, i32
  }
  func.func @transform_5(%arg0: i32) -> (i32, i32) {
    %c0_i32 = arith.constant 0 : i32
    %c0_i32_0 = arith.constant 0 : i32
    %c0_i32_1 = arith.constant 0 : i32
    return %c0_i32, %c0_i32_0 : i32, i32
  }
  func.func @transform_6(%arg0: i32) -> (i32, i32) {
    %c0_i32 = arith.constant 0 : i32
    %c0_i32_0 = arith.constant 0 : i32
    %c0_i32_1 = arith.constant 0 : i32
    return %c0_i32, %c0_i32_0 : i32, i32
  }
  func.func @transform_7(%arg0: i32) -> (i32, i32) {
    %c0_i32 = arith.constant 0 : i32
    %c0_i32_0 = arith.constant 0 : i32
    return %arg0, %c0_i32 : i32, i32
  }
}

module attributes {stable_mosaic.version = 11 : i64} {
  func.func @discriminator_kernel(%arg0: i32, %arg1: memref<32x784xbf16, #tpu.memory_space<vmem>>, %arg2: memref<784x256xbf16, #tpu.memory_space<vmem>>, %arg3: memref<1x256xf32, #tpu.memory_space<vmem>>, %arg4: memref<256x256xbf16, #tpu.memory_space<vmem>>, %arg5: memref<1x256xf32, #tpu.memory_space<vmem>>, %arg6: memref<1x256xf32, #tpu.memory_space<vmem>>, %arg7: memref<1x1xf32, #tpu.memory_space<vmem>>, %arg8: memref<32x1xf32, #tpu.memory_space<vmem>>) attributes {dimension_semantics = [#tpu.dimension_semantics<parallel>], iteration_bounds = array<i64: 2>, scalar_prefetch = 0 : i64, scratch_operands = 0 : i64, tpu.core_type = #tpu.core_type<tc>, window_params = [{transform_indices = @transform_0, window_bounds = array<i64: 32, 784>}, {pipeline_mode = #tpu.pipeline_mode<synchronous>, transform_indices = @transform_1, window_bounds = array<i64: 784, 256>}, {pipeline_mode = #tpu.pipeline_mode<synchronous>, transform_indices = @transform_2, window_bounds = array<i64: 1, 256>}, {pipeline_mode = #tpu.pipeline_mode<synchronous>, transform_indices = @transform_3, window_bounds = array<i64: 256, 256>}, {pipeline_mode = #tpu.pipeline_mode<synchronous>, transform_indices = @transform_4, window_bounds = array<i64: 1, 256>}, {pipeline_mode = #tpu.pipeline_mode<synchronous>, transform_indices = @transform_5, window_bounds = array<i64: 1, 256>}, {pipeline_mode = #tpu.pipeline_mode<synchronous>, transform_indices = @transform_6, window_bounds = array<i64: 1, 1>}, {transform_indices = @transform_7, window_bounds = array<i64: 32, 1>}]} {
    %c0 = arith.constant 0 : index
    %c0_0 = arith.constant 0 : index
    %0 = vector.load %arg1[%c0, %c0_0] : memref<32x784xbf16, #tpu.memory_space<vmem>>, vector<32x784xbf16>
    %c0_1 = arith.constant 0 : index
    %c0_2 = arith.constant 0 : index
    %1 = vector.load %arg2[%c0_1, %c0_2] : memref<784x256xbf16, #tpu.memory_space<vmem>>, vector<784x256xbf16>
    %cst = arith.constant dense<0.000000e+00> : vector<32x256xf32>
    %2 = tpu.matmul %0, %1, %cst {dimension_numbers = #tpu.dot_dimension_numbers<[1], [0], [0], [1], [0, 0, 1, 1], [], []>} : vector<32x784xbf16>, vector<784x256xbf16>, vector<32x256xf32> -> vector<32x256xf32>
    %c0_3 = arith.constant 0 : index
    %c0_4 = arith.constant 0 : index
    %3 = vector.load %arg3[%c0_3, %c0_4] : memref<1x256xf32, #tpu.memory_space<vmem>>, vector<1x256xf32>
    %4 = vector.broadcast %3 : vector<1x256xf32> to vector<32x256xf32>
    %5 = arith.addf %2, %4 : vector<32x256xf32>
    %cst_5 = arith.constant 0.000000e+00 : f32
    %6 = vector.broadcast %cst_5 : f32 to vector<32x256xf32>
    %7 = arith.cmpf ogt, %5, %6 : vector<32x256xf32>
    %cst_6 = arith.constant 2.000000e-01 : f32
    %8 = vector.broadcast %cst_6 : f32 to vector<32x256xf32>
    %9 = arith.mulf %8, %5 : vector<32x256xf32>
    %10 = arith.select %7, %5, %9 : vector<32x256xi1>, vector<32x256xf32>
    %11 = arith.truncf %10 : vector<32x256xf32> to vector<32x256xbf16>
    %c0_7 = arith.constant 0 : index
    %c0_8 = arith.constant 0 : index
    %12 = vector.load %arg4[%c0_7, %c0_8] : memref<256x256xbf16, #tpu.memory_space<vmem>>, vector<256x256xbf16>
    %cst_9 = arith.constant dense<0.000000e+00> : vector<32x256xf32>
    %13 = tpu.matmul %11, %12, %cst_9 {dimension_numbers = #tpu.dot_dimension_numbers<[1], [0], [0], [1], [0, 0, 1, 1], [], []>} : vector<32x256xbf16>, vector<256x256xbf16>, vector<32x256xf32> -> vector<32x256xf32>
    %c0_10 = arith.constant 0 : index
    %c0_11 = arith.constant 0 : index
    %14 = vector.load %arg5[%c0_10, %c0_11] : memref<1x256xf32, #tpu.memory_space<vmem>>, vector<1x256xf32>
    %15 = vector.broadcast %14 : vector<1x256xf32> to vector<32x256xf32>
    %16 = arith.addf %13, %15 : vector<32x256xf32>
    %cst_12 = arith.constant 0.000000e+00 : f32
    %17 = vector.broadcast %cst_12 : f32 to vector<32x256xf32>
    %18 = arith.cmpf ogt, %16, %17 : vector<32x256xf32>
    %cst_13 = arith.constant 2.000000e-01 : f32
    %19 = vector.broadcast %cst_13 : f32 to vector<32x256xf32>
    %20 = arith.mulf %19, %16 : vector<32x256xf32>
    %21 = arith.select %18, %16, %20 : vector<32x256xi1>, vector<32x256xf32>
    %c0_14 = arith.constant 0 : index
    %c0_15 = arith.constant 0 : index
    %22 = vector.load %arg6[%c0_14, %c0_15] : memref<1x256xf32, #tpu.memory_space<vmem>>, vector<1x256xf32>
    %23 = vector.broadcast %22 : vector<1x256xf32> to vector<32x256xf32>
    %24 = arith.mulf %21, %23 : vector<32x256xf32>
    %cst_16 = arith.constant dense<0.000000e+00> : vector<32xf32>
    %25 = vector.multi_reduction <add>, %24, %cst_16 [1] : vector<32x256xf32> to vector<32xf32>
    %26 = vector.shape_cast %25 : vector<32xf32> to vector<32x1xf32>
    %c0_17 = arith.constant 0 : index
    %c0_18 = arith.constant 0 : index
    %27 = vector.load %arg7[%c0_17, %c0_18] : memref<1x1xf32, #tpu.memory_space<vmem>>, vector<1x1xf32>
    %28 = vector.broadcast %27 : vector<1x1xf32> to vector<32x1xf32>
    %29 = arith.addf %26, %28 : vector<32x1xf32>
    %c0_19 = arith.constant 0 : index
    %c0_20 = arith.constant 0 : index
    %30 = vector.load %arg8[%c0_19, %c0_20] : memref<32x1xf32, #tpu.memory_space<vmem>>, vector<32x1xf32>
    tpu.vector_store %arg8[%c0_19, %c0_20], %29 {strides = array<i32>} : memref<32x1xf32, #tpu.memory_space<vmem>>, vector<32x1xf32>,
    return
  }
  func.func @transform_0(%arg0: i32) -> (i32, i32) {
    %c0_i32 = arith.constant 0 : i32
    %c0_i32_0 = arith.constant 0 : i32
    return %arg0, %c0_i32 : i32, i32
  }
  func.func @transform_1(%arg0: i32) -> (i32, i32) {
    %c0_i32 = arith.constant 0 : i32
    %c0_i32_0 = arith.constant 0 : i32
    %c0_i32_1 = arith.constant 0 : i32
    return %c0_i32, %c0_i32_0 : i32, i32
  }
  func.func @transform_2(%arg0: i32) -> (i32, i32) {
    %c0_i32 = arith.constant 0 : i32
    %c0_i32_0 = arith.constant 0 : i32
    %c0_i32_1 = arith.constant 0 : i32
    return %c0_i32, %c0_i32_0 : i32, i32
  }
  func.func @transform_3(%arg0: i32) -> (i32, i32) {
    %c0_i32 = arith.constant 0 : i32
    %c0_i32_0 = arith.constant 0 : i32
    %c0_i32_1 = arith.constant 0 : i32
    return %c0_i32, %c0_i32_0 : i32, i32
  }
  func.func @transform_4(%arg0: i32) -> (i32, i32) {
    %c0_i32 = arith.constant 0 : i32
    %c0_i32_0 = arith.constant 0 : i32
    %c0_i32_1 = arith.constant 0 : i32
    return %c0_i32, %c0_i32_0 : i32, i32
  }
  func.func @transform_5(%arg0: i32) -> (i32, i32) {
    %c0_i32 = arith.constant 0 : i32
    %c0_i32_0 = arith.constant 0 : i32
    %c0_i32_1 = arith.constant 0 : i32
    return %c0_i32, %c0_i32_0 : i32, i32
  }
  func.func @transform_6(%arg0: i32) -> (i32, i32) {
    %c0_i32 = arith.constant 0 : i32
    %c0_i32_0 = arith.constant 0 : i32
    %c0_i32_1 = arith.constant 0 : i32
    return %c0_i32, %c0_i32_0 : i32, i32
  }
  func.func @transform_7(%arg0: i32) -> (i32, i32) {
    %c0_i32 = arith.constant 0 : i32
    %c0_i32_0 = arith.constant 0 : i32
    return %arg0, %c0_i32 : i32, i32
  }
}

</mosaic_0001>

<llo_original>
// kernel: tpu_custom_call.1
$region0: #{tpu_custom_call.1}
  #allocation0 [shape = 'u32[]', space=smem, size = 0x4, offset = 0x4, fixed_abs, tag = 'smem constant byte address 0x4 - core index']
  #allocation1 [shape = 'u32[72,128]{1,0:T(1,128)}', space=vmem, size = 0x9000, scoped, tag = 'internal scratch']
  #allocation2 [shape = 'f32[1,1]{1,0:T(1,128)S(1)}', space=vmem, size = 0x200, scoped, tag = 'scoped memory for tpu_custom_call.1']
  %s0 = inlined_call_operand.hbm [shape: bf16[64,784], index: 0, kind: input, shape index: {}]
  %s1 = inlined_call_operand.hbm [shape: bf16[784,256], index: 1, kind: input, shape index: {}]
  %s2 = inlined_call_operand.vmem [shape: f32[1,256], index: 2, kind: input, shape index: {}]
  %s3 = inlined_call_operand.hbm [shape: bf16[256,256], index: 3, kind: input, shape index: {}]
  %s4 = inlined_call_operand.vmem [shape: f32[1,256], index: 4, kind: input, shape index: {}]
  %s5 = inlined_call_operand.vmem [shape: f32[1,256], index: 5, kind: input, shape index: {}]
  %s6 = inlined_call_operand.<no memory space> [shape: f32[1,1], index: 6, kind: input, shape index: {}]
  %s7 = inlined_call_operand.vmem [shape: f32[64,1], index: 7, kind: output, shape index: {}]
  %s8 = sld [smem:[#allocation0]]
  $region73: #{tpu_custom_call.1} parent=0
    _
  %s10 = ssub.s32 1, %s8
  %s11 = scalar_select 0, %s10, %s8
  %v12 = vstv %s6
  %13 = vst [vmem:[#allocation2] sm:$0x1] %v12
  $region1: #{tpu_custom_call.1} parent=0
    #allocation3 [shape = 'u8[114688]{0}', space=vmem, size = 0x1c000, scoped, tag = 'input window, operand 0']
    #allocation4 [shape = 's32[2]{0}', space=sflag, size = 0x8, scoped, tag = 'scoped memory for tpu_custom_call.1']
    #allocation5 [shape = 'u8[401408]{0}', space=vmem, size = 0x62000, scoped, tag = 'input window, operand 1, single buffered']
    #allocation6 [shape = 's32[1]{0}', space=sflag, size = 0x4, scoped, tag = 'scoped memory for tpu_custom_call.1']
    #allocation7 [shape = 'u8[131072]{0}', space=vmem, size = 0x20000, scoped, tag = 'input window, operand 3, single buffered']
    %14 = vsyncpa [#allocation4], 0
    %s15 = scalar_lea.sflag [#allocation4], 1
    %16 = vsyncpa %s15, 0
    %17 = vsyncpa [#allocation6], 0
    loop: start=0, step=1, limit=4
    $region2: #{tpu_custom_call.1} parent=1 // loop_pre_header
      _
    $region3: #{tpu_custom_call.1} parent=1 // loop_header
      %s19 = sphi 0, %s23
      %p20 = scmp.ge.s32.totalorder %s19, 4
      %s29 = sphi 0, %s31
      %s32 = sphi 0, %s29
      %s33 = sphi 0, %s32
      %s49 = sphi 0, %s33
      %s53 = sphi 0, %s53
      %s55 = sphi 0, %s53
      %s56 = sphi 0, %s55
      %s70 = sphi 0, %s56
      %s74 = sphi 0, %s74
      %s76 = sphi 0, %s74
      %s77 = sphi 0, %s76
      %s91 = sphi 0, %s77
      %s95 = sphi 0, %s95
      %s97 = sphi 0, %s95
      %s98 = sphi 0, %s97
      %s112 = sphi 0, %s98
      %s116 = sphi 0, %s116
      %s118 = sphi 0, %s116
      %s119 = sphi 0, %s118
      %s133 = sphi 0, %s119
      %s137 = sphi 0, %s137
      %s139 = sphi 0, %s137
      %s140 = sphi 0, %s139
      %s154 = sphi 0, %s140
      %s158 = sphi 0, %s158
      %s160 = sphi 0, %s158
      %s161 = sphi 0, %s160
      %s175 = sphi 0, %s161
      %s181 = sphi 0, %s183
      %s184 = sphi 0, %s181
      %s185 = sphi 0, %s184
      %s201 = sphi 0, %s185
    $region4: #{tpu_custom_call.1} parent=1 // loop_header_branch
      %22 = sbr.rel (%p20) target = $region8
    $region5: #{tpu_custom_call.1} parent=1 // loop_body
      %s24 = ssub.s32 %s19, 1
      %s25 = ssub.s32 %s19, 2
      %s26 = sadd.s32 %s19, 1
      %s27 = ssub.s32 %s19, %s26
      %p28 = scmp.eq.s32.totalorder %s27, 0
      %s30 = sadd.s32 %s29, 1
      %s31 = scalar_select %p28, %s29, %s30
      %p34 = pneg %p28
      %p35 = scmp.eq.s32.totalorder %s19, 1
      %p36 = por %p34, %p35
      %p37 = scmp.ne.s32.totalorder %s29, %s32
      %p38 = scmp.eq.s32.totalorder %s19, 0
      %p39 = por %p37, %p38
      %p40 = scmp.ne.s32.totalorder %s29, %s32
      %p41 = scmp.eq.s32.totalorder %s24, 1
      %p42 = por %p40, %p41
      %p43 = scmp.ne.s32.totalorder %s32, %s33
      %p44 = scmp.eq.s32.totalorder %s24, 0
      %p45 = por %p43, %p44
      %p46 = scmp.ne.s32.totalorder %s32, %s33
      %p47 = scmp.eq.s32.totalorder %s25, 1
      %p48 = por %p46, %p47
      %p50 = scmp.ne.s32.totalorder %s33, %s49
      %p51 = scmp.eq.s32.totalorder %s25, 0
      %p52 = por %p50, %p51
      %s54 = sadd.s32 %s53, 1
      %p57 = scmp.eq.s32.totalorder %s19, 1
      %p58 = scmp.ne.s32.totalorder %s53, %s55
      %p59 = scmp.eq.s32.totalorder %s19, 0
      %p60 = por %p58, %p59
      %p61 = scmp.ne.s32.totalorder %s53, %s55
      %p62 = scmp.eq.s32.totalorder %s24, 1
      %p63 = por %p61, %p62
      %p64 = scmp.ne.s32.totalorder %s55, %s56
      %p65 = scmp.eq.s32.totalorder %s24, 0
      %p66 = por %p64, %p65
      %p67 = scmp.ne.s32.totalorder %s55, %s56
      %p68 = scmp.eq.s32.totalorder %s25, 1
      %p69 = por %p67, %p68
      %p71 = scmp.ne.s32.totalorder %s56, %s70
      %p72 = scmp.eq.s32.totalorder %s25, 0
      %p73 = por %p71, %p72
      %s75 = sadd.s32 %s74, 1
      %p78 = scmp.eq.s32.totalorder %s19, 1
      %p79 = scmp.ne.s32.totalorder %s74, %s76
      %p80 = scmp.eq.s32.totalorder %s19, 0
      %p81 = por %p79, %p80
      %p82 = scmp.ne.s32.totalorder %s74, %s76
      %p83 = scmp.eq.s32.totalorder %s24, 1
      %p84 = por %p82, %p83
      %p85 = scmp.ne.s32.totalorder %s76, %s77
      %p86 = scmp.eq.s32.totalorder %s24, 0
      %p87 = por %p85, %p86
      %p88 = scmp.ne.s32.totalorder %s76, %s77
      %p89 = scmp.eq.s32.totalorder %s25, 1
      %p90 = por %p88, %p89
      %p92 = scmp.ne.s32.totalorder %s77, %s91
      %p93 = scmp.eq.s32.totalorder %s25, 0
      %p94 = por %p92, %p93
      %s96 = sadd.s32 %s95, 1
      %p99 = scmp.eq.s32.totalorder %s19, 1
      %p100 = scmp.ne.s32.totalorder %s95, %s97
      %p101 = scmp.eq.s32.totalorder %s19, 0
      %p102 = por %p100, %p101
      %p103 = scmp.ne.s32.totalorder %s95, %s97
      %p104 = scmp.eq.s32.totalorder %s24, 1
      %p105 = por %p103, %p104
      %p106 = scmp.ne.s32.totalorder %s97, %s98
      %p107 = scmp.eq.s32.totalorder %s24, 0
      %p108 = por %p106, %p107
      %p109 = scmp.ne.s32.totalorder %s97, %s98
      %p110 = scmp.eq.s32.totalorder %s25, 1
      %p111 = por %p109, %p110
      %p113 = scmp.ne.s32.totalorder %s98, %s112
      %p114 = scmp.eq.s32.totalorder %s25, 0
      %p115 = por %p113, %p114
      %s117 = sadd.s32 %s116, 1
      %p120 = scmp.eq.s32.totalorder %s19, 1
      %p121 = scmp.ne.s32.totalorder %s116, %s118
      %p122 = scmp.eq.s32.totalorder %s19, 0
      %p123 = por %p121, %p122
      %p124 = scmp.ne.s32.totalorder %s116, %s118
      %p125 = scmp.eq.s32.totalorder %s24, 1
      %p126 = por %p124, %p125
      %p127 = scmp.ne.s32.totalorder %s118, %s119
      %p128 = scmp.eq.s32.totalorder %s24, 0
      %p129 = por %p127, %p128
      %p130 = scmp.ne.s32.totalorder %s118, %s119
      %p131 = scmp.eq.s32.totalorder %s25, 1
      %p132 = por %p130, %p131
      %p134 = scmp.ne.s32.totalorder %s119, %s133
      %p135 = scmp.eq.s32.totalorder %s25, 0
      %p136 = por %p134, %p135
      %s138 = sadd.s32 %s137, 1
      %p141 = scmp.eq.s32.totalorder %s19, 1
      %p142 = scmp.ne.s32.totalorder %s137, %s139
      %p143 = scmp.eq.s32.totalorder %s19, 0
      %p144 = por %p142, %p143
      %p145 = scmp.ne.s32.totalorder %s137, %s139
      %p146 = scmp.eq.s32.totalorder %s24, 1
      %p147 = por %p145, %p146
      %p148 = scmp.ne.s32.totalorder %s139, %s140
      %p149 = scmp.eq.s32.totalorder %s24, 0
      %p150 = por %p148, %p149
      %p151 = scmp.ne.s32.totalorder %s139, %s140
      %p152 = scmp.eq.s32.totalorder %s25, 1
      %p153 = por %p151, %p152
      %p155 = scmp.ne.s32.totalorder %s140, %s154
      %p156 = scmp.eq.s32.totalorder %s25, 0
      %p157 = por %p155, %p156
      %s159 = sadd.s32 %s158, 1
      %p162 = scmp.eq.s32.totalorder %s19, 1
      %p163 = scmp.ne.s32.totalorder %s158, %s160
      %p164 = scmp.eq.s32.totalorder %s19, 0
      %p165 = por %p163, %p164
      %p166 = scmp.ne.s32.totalorder %s158, %s160
      %p167 = scmp.eq.s32.totalorder %s24, 1
      %p168 = por %p166, %p167
      %p169 = scmp.ne.s32.totalorder %s160, %s161
      %p170 = scmp.eq.s32.totalorder %s24, 0
      %p171 = por %p169, %p170
      %p172 = scmp.ne.s32.totalorder %s160, %s161
      %p173 = scmp.eq.s32.totalorder %s25, 1
      %p174 = por %p172, %p173
      %p176 = scmp.ne.s32.totalorder %s161, %s175
      %p177 = scmp.eq.s32.totalorder %s25, 0
      %p178 = por %p176, %p177
      %s179 = ssub.s32 %s19, %s26
      %p180 = scmp.eq.s32.totalorder %s179, 0
      %s182 = sadd.s32 %s181, 1
      %s183 = scalar_select %p180, %s181, %s182
      %p186 = pneg %p180
      %p187 = scmp.eq.s32.totalorder %s19, 1
      %p188 = por %p186, %p187
      %p189 = scmp.ne.s32.totalorder %s181, %s184
      %p190 = scmp.eq.s32.totalorder %s19, 0
      %p191 = por %p189, %p190
      %p192 = scmp.ne.s32.totalorder %s181, %s184
      %p193 = scmp.eq.s32.totalorder %s24, 1
      %p194 = por %p192, %p193
      %p195 = scmp.ne.s32.totalorder %s184, %s185
      %p196 = scmp.eq.s32.totalorder %s24, 0
      %p197 = por %p195, %p196
      %p198 = scmp.ne.s32.totalorder %s184, %s185
      %p199 = scmp.eq.s32.totalorder %s25, 1
      %p200 = por %p198, %p199
      %p202 = scmp.ne.s32.totalorder %s185, %s201
      %p203 = scmp.eq.s32.totalorder %s25, 0
      %p204 = por %p202, %p203
      %p205 = scmp.le.s32.totalorder 1, %s19
      %p206 = scmp.lt.s32.totalorder %s19, 3
      %p207 = pnand %p205, %p206
      %p208 = pneg %p207
      // Predicated region
      $region9: #{tpu_custom_call.1} parent=5 // pred_check
        _
      $region10: #{tpu_custom_call.1} parent=5 // pred_check_branch
        %210 = sbr.rel (%p207) target = $region12
      $region11: #{tpu_custom_call.1} parent=5 // pred_region
        %s211 = ssub.s32 %s19, 1
        // Predicated region
        $region13: #{tpu_custom_call.1} parent=11 // pred_check
          %p212 = pneg %p66
        $region14: #{tpu_custom_call.1} parent=11 // pred_check_branch
          %214 = sbr.rel (%p212) target = $region16
        $region15: #{tpu_custom_call.1} parent=11 // pred_region
          %216 = vsyncadd [#allocation6], 0
          %s217 = sshll.u32 %s1, 4
          %s218 = int_to_ptr.hbm [resolvable:$true] %s217
          %s219 = sshll.u32 [#allocation5], 4
          %s220 = int_to_ptr.vmem [resolvable:$true] %s219
          %225 = dma.hbm_to_vmem [thread:$0]  %s218, 12544, %s220, [#allocation6], 128, 128, 8
        $region16: #{tpu_custom_call.1} parent=11 // pred_fallthru
          _
        // Predicated region
        $region17: #{tpu_custom_call.1} parent=11 // pred_check
          %p226 = pneg %p87
        $region18: #{tpu_custom_call.1} parent=11 // pred_check_branch
          %228 = sbr.rel (%p226) target = $region20
        $region19: #{tpu_custom_call.1} parent=11 // pred_region
          _
        $region20: #{tpu_custom_call.1} parent=11 // pred_fallthru
          _
        // Predicated region
        $region21: #{tpu_custom_call.1} parent=11 // pred_check
          %p229 = pneg %p108
        $region22: #{tpu_custom_call.1} parent=11 // pred_check_branch
          %231 = sbr.rel (%p229) target = $region24
        $region23: #{tpu_custom_call.1} parent=11 // pred_region
          %233 = vsyncadd [#allocation6], 0
          %s234 = sshll.u32 %s3, 4
          %s235 = int_to_ptr.hbm [resolvable:$true] %s234
          %s236 = sshll.u32 [#allocation7], 4
          %s237 = int_to_ptr.vmem [resolvable:$true] %s236
          %242 = dma.hbm_to_vmem [thread:$0]  %s235, 4096, %s237, [#allocation6], 128, 128, 8
        $region24: #{tpu_custom_call.1} parent=11 // pred_fallthru
          _
        // Predicated region
        $region25: #{tpu_custom_call.1} parent=11 // pred_check
          %p243 = pneg %p129
        $region26: #{tpu_custom_call.1} parent=11 // pred_check_branch
          %245 = sbr.rel (%p243) target = $region28
        $region27: #{tpu_custom_call.1} parent=11 // pred_region
          _
        $region28: #{tpu_custom_call.1} parent=11 // pred_fallthru
          _
        // Predicated region
        $region29: #{tpu_custom_call.1} parent=11 // pred_check
          %p246 = pneg %p150
        $region30: #{tpu_custom_call.1} parent=11 // pred_check_branch
          %248 = sbr.rel (%p246) target = $region32
        $region31: #{tpu_custom_call.1} parent=11 // pred_region
          _
        $region32: #{tpu_custom_call.1} parent=11 // pred_fallthru
          _
        // Predicated region
        $region33: #{tpu_custom_call.1} parent=11 // pred_check
          %p249 = pneg %p171
        $region34: #{tpu_custom_call.1} parent=11 // pred_check_branch
          %251 = sbr.rel (%p249) target = $region36
        $region35: #{tpu_custom_call.1} parent=11 // pred_region
          _
        $region36: #{tpu_custom_call.1} parent=11 // pred_fallthru
          _
      $region12: #{tpu_custom_call.1} parent=5 // pred_fallthru
        _
      %p252 = scmp.lt.s32.totalorder %s19, 2
      // Predicated region
      $region37: #{tpu_custom_call.1} parent=5 // pred_check
        %p253 = pneg %p252
      $region38: #{tpu_custom_call.1} parent=5 // pred_check_branch
        %255 = sbr.rel (%p253) target = $region40
      $region39: #{tpu_custom_call.1} parent=5 // pred_region
        // Predicated region
        $region41: #{tpu_custom_call.1} parent=39 // pred_check
          %p256 = pneg %p39
        $region42: #{tpu_custom_call.1} parent=39 // pred_check_branch
          %258 = sbr.rel (%p256) target = $region44
        $region43: #{tpu_custom_call.1} parent=39 // pred_region
          %s259 = sand.u32 %s29, 1
          %s260 = scalar_lea.sflag [#allocation4], %s259
          %s261 = sand.u32 %s29, 1
          %s262 = smul.addr %s261, 112
          %s263 = scalar_lea.vmem [#allocation3], %s262
          %s264 = smul.u32 4, %s19
          %266 = vsyncadd %s260, 0
          %s267 = smul.addr %s264, 7
          %s268 = smul.addr %s267, 4
          %s269 = scalar_lea.hbm %s0, %s268
          %s270 = sshll.u32 %s269, 4
          %s271 = int_to_ptr.hbm [resolvable:$true] %s270
          %s272 = sshll.u32 %s263, 4
          %s273 = int_to_ptr.vmem [resolvable:$true] %s272
          %278 = dma.hbm_to_vmem [thread:$0]  %s271, 1792, %s273, %s260, 448, 448, 28
        $region44: #{tpu_custom_call.1} parent=39 // pred_fallthru
          _
      $region40: #{tpu_custom_call.1} parent=5 // pred_fallthru
        _
      %p279 = scmp.le.s32.totalorder 1, %s19
      %p280 = scmp.lt.s32.totalorder %s19, 3
      %p281 = pnand %p279, %p280
      %p282 = pneg %p281
      // Predicated region
      $region45: #{tpu_custom_call.1} parent=5 // pred_check
        _
      $region46: #{tpu_custom_call.1} parent=5 // pred_check_branch
        %284 = sbr.rel (%p281) target = $region48
      $region47: #{tpu_custom_call.1} parent=5 // pred_region
        %s285 = ssub.s32 %s19, 1
        %s286 = sand.u32 %s32, 1
        %s287 = scalar_lea.sflag [#allocation4], %s286
        %s288 = sand.u32 %s32, 1
        %s289 = smul.addr %s288, 112
        %s290 = scalar_lea.vmem [#allocation3], %s289
        // Predicated region
        $region49: #{tpu_custom_call.1} parent=47 // pred_check
          %p291 = pneg %p45
        $region50: #{tpu_custom_call.1} parent=47 // pred_check_branch
          %293 = sbr.rel (%p291) target = $region52
        $region51: #{tpu_custom_call.1} parent=47 // pred_region
          %295 = dma.done %s287, 1792
        $region52: #{tpu_custom_call.1} parent=47 // pred_fallthru
          _
        // Predicated region
        $region53: #{tpu_custom_call.1} parent=47 // pred_check
          %p296 = pneg %p66
        $region54: #{tpu_custom_call.1} parent=47 // pred_check_branch
          %298 = sbr.rel (%p296) target = $region56
        $region55: #{tpu_custom_call.1} parent=47 // pred_region
          %300 = dma.done [#allocation6], 12544
        $region56: #{tpu_custom_call.1} parent=47 // pred_fallthru
          _
        // Predicated region
        $region57: #{tpu_custom_call.1} parent=47 // pred_check
          %p301 = pneg %p108
        $region58: #{tpu_custom_call.1} parent=47 // pred_check_branch
          %303 = sbr.rel (%p301) target = $region60
        $region59: #{tpu_custom_call.1} parent=47 // pred_region
          %305 = dma.done [#allocation6], 4096
        $region60: #{tpu_custom_call.1} parent=47 // pred_fallthru
          _
        %s306 = sand.u32 %s32, 1
        %s307 = scalar_lea.sflag [#allocation4], %s306
        %s308 = sand.u32 %s32, 1
        %s309 = smul.addr %s308, 112
        %s310 = scalar_lea.vmem [#allocation3], %s309
        %p311 = pneg %p45
        %p312 = pneg %p42
        %p313 = pneg %p66
        %p314 = pneg %p63
        %p315 = pneg %p87
        %p316 = pneg %p84
        %p317 = pneg %p108
        %p318 = pneg %p105
        %p319 = pneg %p129
        %p320 = pneg %p126
        %p321 = pneg %p150
        %p322 = pneg %p147
        %p323 = pneg %p171
        %p324 = pneg %p168
        %p325 = pneg %p197
        %p326 = pneg %p194
        %s327 = smul.u32 4, %s24
        %p328 = scmp.lt.s32.totalorder %s327, 7
        %s329 = scalar_select %p328, %s327, 7
        %s330 = smul.addr %s329, 8
        %s331 = scalar_lea.vmem %s7, %s330
        %s332 = smul.u32 4, %s24
        %s333 = smul.u32 4, %s24
        %p334 = scmp.lt.s32.totalorder %s333, 7
        %s335 = scalar_select %p334, %s333, 7
        %s336 = smul.addr %s335, 8
        %s337 = scalar_lea.vmem %s7, %s336
        %s338 = smul.u32 4, %s24
        %v340 = vld [vmem:[%s290] sm:$0xff]
        %v341 = vld [vmem:[%s290 + $0x8] sm:$0xff]
        %v342 = vld [vmem:[%s290 + $0x10] sm:$0xff]
        %v343 = vld [vmem:[%s290 + $0x18] sm:$0xf]
        %v344 = vld [vmem:[%s290 + $0x1c] sm:$0xff]
        %v345 = vld [vmem:[%s290 + $0x24] sm:$0xff]
        %v346 = vld [vmem:[%s290 + $0x2c] sm:$0xff]
        %v347 = vld [vmem:[%s290 + $0x34] sm:$0xf]
        %v348 = vld [vmem:[%s290 + $0x38] sm:$0xff]
        %v349 = vld [vmem:[%s290 + $0x40] sm:$0xff]
        %v350 = vld [vmem:[%s290 + $0x48] sm:$0xff]
        %v351 = vld [vmem:[%s290 + $0x50] sm:$0xf]
        %v352 = vld [vmem:[%s290 + $0x54] sm:$0xff]
        %v353 = vld [vmem:[%s290 + $0x5c] sm:$0xff]
        %v354 = vld [vmem:[%s290 + $0x64] sm:$0xff]
        %v355 = vld [vmem:[%s290 + $0x6c] sm:$0xf]
        %v356 = vld [vmem:[#allocation5] sm:$0xff]
        %v357 = vld [vmem:[#allocation5 + $0x8] sm:$0xff]
        %v358 = vld [vmem:[#allocation5 + $0x10] sm:$0xff]
        %v359 = vld [vmem:[#allocation5 + $0x18] sm:$0xff]
        %v360 = vld [vmem:[#allocation5 + $0x20] sm:$0xff]
        %v361 = vld [vmem:[#allocation5 + $0x28] sm:$0xff]
        %v362 = vld [vmem:[#allocation5 + $0x30] sm:$0xff]
        %v363 = vld [vmem:[#allocation5 + $0x38] sm:$0xff]
        %v364 = vld [vmem:[#allocation5 + $0x40] sm:$0xff]
        %v365 = vld [vmem:[#allocation5 + $0x48] sm:$0xff]
        %v366 = vld [vmem:[#allocation5 + $0x50] sm:$0xff]
        %v367 = vld [vmem:[#allocation5 + $0x58] sm:$0xff]
        %v368 = vld [vmem:[#allocation5 + $0x60] sm:$0xff]
        %v369 = vld [vmem:[#allocation5 + $0x68] sm:$0xff]
        %v370 = vld [vmem:[#allocation5 + $0x70] sm:$0xff]
        %v371 = vld [vmem:[#allocation5 + $0x78] sm:$0xff]
        %v372 = vld [vmem:[#allocation5 + $0x80] sm:$0xff]
        %v373 = vld [vmem:[#allocation5 + $0x88] sm:$0xff]
        %v374 = vld [vmem:[#allocation5 + $0x90] sm:$0xff]
        %v375 = vld [vmem:[#allocation5 + $0x98] sm:$0xff]
        %v376 = vld [vmem:[#allocation5 + $0xa0] sm:$0xff]
        %v377 = vld [vmem:[#allocation5 + $0xa8] sm:$0xff]
        %v378 = vld [vmem:[#allocation5 + $0xb0] sm:$0xff]
        %v379 = vld [vmem:[#allocation5 + $0xb8] sm:$0xff]
        %v380 = vld [vmem:[#allocation5 + $0xc0] sm:$0xff]
        %v381 = vld [vmem:[#allocation5 + $0xc8] sm:$0xff]
        %v382 = vld [vmem:[#allocation5 + $0xd0] sm:$0xff]
        %v383 = vld [vmem:[#allocation5 + $0xd8] sm:$0xff]
        %v384 = vld [vmem:[#allocation5 + $0xe0] sm:$0xff]
        %v385 = vld [vmem:[#allocation5 + $0xe8] sm:$0xff]
        %v386 = vld [vmem:[#allocation5 + $0xf0] sm:$0xff]
        %v387 = vld [vmem:[#allocation5 + $0xf8] sm:$0xff]
        %v388 = vld [vmem:[#allocation5 + $0x100] sm:$0xff]
        %v389 = vld [vmem:[#allocation5 + $0x108] sm:$0xff]
        %v390 = vld [vmem:[#allocation5 + $0x110] sm:$0xff]
        %v391 = vld [vmem:[#allocation5 + $0x118] sm:$0xff]
        %v392 = vld [vmem:[#allocation5 + $0x120] sm:$0xff]
        %v393 = vld [vmem:[#allocation5 + $0x128] sm:$0xff]
        %v394 = vld [vmem:[#allocation5 + $0x130] sm:$0xff]
        %v395 = vld [vmem:[#allocation5 + $0x138] sm:$0xff]
        %v396 = vld [vmem:[#allocation5 + $0x140] sm:$0xff]
        %v397 = vld [vmem:[#allocation5 + $0x148] sm:$0xff]
        %v398 = vld [vmem:[#allocation5 + $0x150] sm:$0xff]
        %v399 = vld [vmem:[#allocation5 + $0x158] sm:$0xff]
        %v400 = vld [vmem:[#allocation5 + $0x160] sm:$0xff]
        %v401 = vld [vmem:[#allocation5 + $0x168] sm:$0xff]
        %v402 = vld [vmem:[#allocation5 + $0x170] sm:$0xff]
        %v403 = vld [vmem:[#allocation5 + $0x178] sm:$0xff]
        %v404 = vld [vmem:[#allocation5 + $0x180] sm:$0xff]
        %v405 = vld [vmem:[#allocation5 + $0x188] sm:$0xff]
        %v406 = vld [vmem:[#allocation5 + $0x190] sm:$0xff]
        %v407 = vld [vmem:[#allocation5 + $0x198] sm:$0xff]
        %v408 = vld [vmem:[#allocation5 + $0x1a0] sm:$0xff]
        %v409 = vld [vmem:[#allocation5 + $0x1a8] sm:$0xff]
        %v410 = vld [vmem:[#allocation5 + $0x1b0] sm:$0xff]
        %v411 = vld [vmem:[#allocation5 + $0x1b8] sm:$0xff]
        %v412 = vld [vmem:[#allocation5 + $0x1c0] sm:$0xff]
        %v413 = vld [vmem:[#allocation5 + $0x1c8] sm:$0xff]
        %v414 = vld [vmem:[#allocation5 + $0x1d0] sm:$0xff]
        %v415 = vld [vmem:[#allocation5 + $0x1d8] sm:$0xff]
        %v416 = vld [vmem:[#allocation5 + $0x1e0] sm:$0xff]
        %v417 = vld [vmem:[#allocation5 + $0x1e8] sm:$0xff]
        %v418 = vld [vmem:[#allocation5 + $0x1f0] sm:$0xff]
        %v419 = vld [vmem:[#allocation5 + $0x1f8] sm:$0xff]
        %v420 = vld [vmem:[#allocation5 + $0x200] sm:$0xff]
        %v421 = vld [vmem:[#allocation5 + $0x208] sm:$0xff]
        %v422 = vld [vmem:[#allocation5 + $0x210] sm:$0xff]
        %v423 = vld [vmem:[#allocation5 + $0x218] sm:$0xff]
        %v424 = vld [vmem:[#allocation5 + $0x220] sm:$0xff]
        %v425 = vld [vmem:[#allocation5 + $0x228] sm:$0xff]
        %v426 = vld [vmem:[#allocation5 + $0x230] sm:$0xff]
        %v427 = vld [vmem:[#allocation5 + $0x238] sm:$0xff]
        %v428 = vld [vmem:[#allocation5 + $0x240] sm:$0xff]
        %v429 = vld [vmem:[#allocation5 + $0x248] sm:$0xff]
        %v430 = vld [vmem:[#allocation5 + $0x250] sm:$0xff]
        %v431 = vld [vmem:[#allocation5 + $0x258] sm:$0xff]
        %v432 = vld [vmem:[#allocation5 + $0x260] sm:$0xff]
        %v433 = vld [vmem:[#allocation5 + $0x268] sm:$0xff]
        %v434 = vld [vmem:[#allocation5 + $0x270] sm:$0xff]
        %v435 = vld [vmem:[#allocation5 + $0x278] sm:$0xff]
        %v436 = vld [vmem:[#allocation5 + $0x280] sm:$0xff]
        %v437 = vld [vmem:[#allocation5 + $0x288] sm:$0xff]
        %v438 = vld [vmem:[#allocation5 + $0x290] sm:$0xff]
        %v439 = vld [vmem:[#allocation5 + $0x298] sm:$0xff]
        %v440 = vld [vmem:[#allocation5 + $0x2a0] sm:$0xff]
        %v441 = vld [vmem:[#allocation5 + $0x2a8] sm:$0xff]
        %v442 = vld [vmem:[#allocation5 + $0x2b0] sm:$0xff]
        %v443 = vld [vmem:[#allocation5 + $0x2b8] sm:$0xff]
        %v444 = vld [vmem:[#allocation5 + $0x2c0] sm:$0xff]
        %v445 = vld [vmem:[#allocation5 + $0x2c8] sm:$0xff]
        %v446 = vld [vmem:[#allocation5 + $0x2d0] sm:$0xff]
        %v447 = vld [vmem:[#allocation5 + $0x2d8] sm:$0xff]
        %v448 = vld [vmem:[#allocation5 + $0x2e0] sm:$0xff]
        %v449 = vld [vmem:[#allocation5 + $0x2e8] sm:$0xff]
        %v450 = vld [vmem:[#allocation5 + $0x2f0] sm:$0xff]
        %v451 = vld [vmem:[#allocation5 + $0x2f8] sm:$0xff]
        %v452 = vld [vmem:[#allocation5 + $0x300] sm:$0xff]
        %v453 = vld [vmem:[#allocation5 + $0x308] sm:$0xff]
        %v454 = vld [vmem:[%s2] sm:$0x3]
        %v456 = vperm.slane %v454, 0
        %v457 = vperm.slane %v454, 1
        %v476 = vunpack.c.l.b16 %v340
        %v477 = vunpack.c.h.b16 %v340
        %v478 = vunpack.c.l.b16 %v341
        %v479 = vunpack.c.h.b16 %v341
        %v480 = vunpack.c.l.b16 %v342
        %v481 = vunpack.c.h.b16 %v342
        %v482 = vunpack.c.l.b16 %v343
        %v483 = vunpack.c.l.b16 %v344
        %v484 = vunpack.c.h.b16 %v344
        %v485 = vunpack.c.l.b16 %v345
        %v486 = vunpack.c.h.b16 %v345
        %v487 = vunpack.c.l.b16 %v346
        %v488 = vunpack.c.h.b16 %v346
        %v489 = vunpack.c.l.b16 %v347
        %v490 = vunpack.c.l.b16 %v348
        %v491 = vunpack.c.h.b16 %v348
        %v492 = vunpack.c.l.b16 %v349
        %v493 = vunpack.c.h.b16 %v349
        %v494 = vunpack.c.l.b16 %v350
        %v495 = vunpack.c.h.b16 %v350
        %v496 = vunpack.c.l.b16 %v351
        %v497 = vunpack.c.l.b16 %v352
        %v498 = vunpack.c.h.b16 %v352
        %v499 = vunpack.c.l.b16 %v353
        %v500 = vunpack.c.h.b16 %v353
        %v501 = vunpack.c.l.b16 %v354
        %v502 = vunpack.c.h.b16 %v354
        %v503 = vunpack.c.l.b16 %v355
        %v504 = vpack.c.b16 %v483, %v476
        %v505 = vpack.c.b16 %v484, %v477
        %v506 = vpack.c.b16 %v485, %v478
        %v507 = vpack.c.b16 %v486, %v479
        %v508 = vpack.c.b16 %v487, %v480
        %v509 = vpack.c.b16 %v488, %v481
        %v510 = vpack.c.b16 %v489, %v482
        %v511 = vpack.c.b16 %v497, %v490
        %v512 = vpack.c.b16 %v498, %v491
        %v513 = vpack.c.b16 %v499, %v492
        %v514 = vpack.c.b16 %v500, %v493
        %v515 = vpack.c.b16 %v501, %v494
        %v516 = vpack.c.b16 %v502, %v495
        %v517 = vpack.c.b16 %v503, %v496
        %v628 = vunpack.c.l.b16 %v356
        %v629 = vunpack.c.h.b16 %v356
        %v630 = vunpack.c.l.b16 %v357
        %v631 = vunpack.c.h.b16 %v357
        %v632 = vunpack.c.l.b16 %v358
        %v633 = vunpack.c.h.b16 %v358
        %v634 = vunpack.c.l.b16 %v359
        %v635 = vunpack.c.h.b16 %v359
        %v636 = vunpack.c.l.b16 %v360
        %v637 = vunpack.c.h.b16 %v360
        %v638 = vunpack.c.l.b16 %v361
        %v639 = vunpack.c.h.b16 %v361
        %v640 = vunpack.c.l.b16 %v362
        %v641 = vunpack.c.h.b16 %v362
        %v642 = vunpack.c.l.b16 %v363
        %v643 = vunpack.c.h.b16 %v363
        %v644 = vunpack.c.l.b16 %v364
        %v645 = vunpack.c.h.b16 %v364
        %v646 = vunpack.c.l.b16 %v365
        %v647 = vunpack.c.h.b16 %v365
        %v648 = vunpack.c.l.b16 %v366
        %v649 = vunpack.c.h.b16 %v366
        %v650 = vunpack.c.l.b16 %v367
        %v651 = vunpack.c.h.b16 %v367
        %v652 = vunpack.c.l.b16 %v368
        %v653 = vunpack.c.h.b16 %v368
        %v654 = vunpack.c.l.b16 %v369
        %v655 = vunpack.c.h.b16 %v369
        %v656 = vunpack.c.l.b16 %v370
        %v657 = vunpack.c.h.b16 %v370
        %v658 = vunpack.c.l.b16 %v371
        %v659 = vunpack.c.h.b16 %v371
        %v660 = vunpack.c.l.b16 %v372
        %v661 = vunpack.c.h.b16 %v372
        %v662 = vunpack.c.l.b16 %v373
        %v663 = vunpack.c.h.b16 %v373
        %v664 = vunpack.c.l.b16 %v374
        %v665 = vunpack.c.h.b16 %v374
        %v666 = vunpack.c.l.b16 %v375
        %v667 = vunpack.c.h.b16 %v375
        %v668 = vunpack.c.l.b16 %v376
        %v669 = vunpack.c.h.b16 %v376
        %v670 = vunpack.c.l.b16 %v377
        %v671 = vunpack.c.h.b16 %v377
        %v672 = vunpack.c.l.b16 %v378
        %v673 = vunpack.c.h.b16 %v378
        %v674 = vunpack.c.l.b16 %v379
        %v675 = vunpack.c.h.b16 %v379
        %v676 = vunpack.c.l.b16 %v380
        %v677 = vunpack.c.h.b16 %v380
        %v678 = vunpack.c.l.b16 %v381
        %v679 = vunpack.c.h.b16 %v381
        %v680 = vunpack.c.l.b16 %v382
        %v681 = vunpack.c.h.b16 %v382
        %v682 = vunpack.c.l.b16 %v383
        %v683 = vunpack.c.h.b16 %v383
        %v684 = vunpack.c.l.b16 %v384
        %v685 = vunpack.c.h.b16 %v384
        %v686 = vunpack.c.l.b16 %v385
        %v687 = vunpack.c.h.b16 %v385
        %v688 = vunpack.c.l.b16 %v386
        %v689 = vunpack.c.h.b16 %v386
        %v690 = vunpack.c.l.b16 %v387
        %v691 = vunpack.c.h.b16 %v387
        %v692 = vunpack.c.l.b16 %v388
        %v693 = vunpack.c.h.b16 %v388
        %v694 = vunpack.c.l.b16 %v389
        %v695 = vunpack.c.h.b16 %v389
        %v696 = vunpack.c.l.b16 %v390
        %v697 = vunpack.c.h.b16 %v390
        %v698 = vunpack.c.l.b16 %v391
        %v699 = vunpack.c.h.b16 %v391
        %v700 = vunpack.c.l.b16 %v392
        %v701 = vunpack.c.h.b16 %v392
        %v702 = vunpack.c.l.b16 %v393
        %v703 = vunpack.c.h.b16 %v393
        %v704 = vunpack.c.l.b16 %v394
        %v705 = vunpack.c.h.b16 %v394
        %v706 = vunpack.c.l.b16 %v395
        %v707 = vunpack.c.h.b16 %v395
        %v708 = vunpack.c.l.b16 %v396
        %v709 = vunpack.c.h.b16 %v396
        %v710 = vunpack.c.l.b16 %v397
        %v711 = vunpack.c.h.b16 %v397
        %v712 = vunpack.c.l.b16 %v398
        %v713 = vunpack.c.h.b16 %v398
        %v714 = vunpack.c.l.b16 %v399
        %v715 = vunpack.c.h.b16 %v399
        %v716 = vunpack.c.l.b16 %v400
        %v717 = vunpack.c.h.b16 %v400
        %v718 = vunpack.c.l.b16 %v401
        %v719 = vunpack.c.h.b16 %v401
        %v720 = vunpack.c.l.b16 %v402
        %v721 = vunpack.c.h.b16 %v402
        %v722 = vunpack.c.l.b16 %v403
        %v723 = vunpack.c.h.b16 %v403
        %v724 = vunpack.c.l.b16 %v404
        %v725 = vunpack.c.h.b16 %v404
        %v726 = vunpack.c.l.b16 %v405
        %v727 = vunpack.c.h.b16 %v405
        %v728 = vunpack.c.l.b16 %v406
        %v729 = vunpack.c.h.b16 %v406
        %v730 = vunpack.c.l.b16 %v407
        %v731 = vunpack.c.h.b16 %v407
        %v732 = vunpack.c.l.b16 %v408
        %v733 = vunpack.c.h.b16 %v408
        %v734 = vunpack.c.l.b16 %v409
        %v735 = vunpack.c.h.b16 %v409
        %v736 = vunpack.c.l.b16 %v410
        %v737 = vunpack.c.h.b16 %v410
        %v738 = vunpack.c.l.b16 %v411
        %v739 = vunpack.c.h.b16 %v411
        %v740 = vunpack.c.l.b16 %v412
        %v741 = vunpack.c.h.b16 %v412
        %v742 = vunpack.c.l.b16 %v413
        %v743 = vunpack.c.h.b16 %v413
        %v744 = vunpack.c.l.b16 %v414
        %v745 = vunpack.c.h.b16 %v414
        %v746 = vunpack.c.l.b16 %v415
        %v747 = vunpack.c.h.b16 %v415
        %v748 = vunpack.c.l.b16 %v416
        %v749 = vunpack.c.h.b16 %v416
        %v750 = vunpack.c.l.b16 %v417
        %v751 = vunpack.c.h.b16 %v417
        %v752 = vunpack.c.l.b16 %v418
        %v753 = vunpack.c.h.b16 %v418
        %v754 = vunpack.c.l.b16 %v419
        %v755 = vunpack.c.h.b16 %v419
        %v756 = vunpack.c.l.b16 %v420
        %v757 = vunpack.c.h.b16 %v420
        %v758 = vunpack.c.l.b16 %v421
        %v759 = vunpack.c.h.b16 %v421
        %v760 = vunpack.c.l.b16 %v422
        %v761 = vunpack.c.h.b16 %v422
        %v762 = vunpack.c.l.b16 %v423
        %v763 = vunpack.c.h.b16 %v423
        %v764 = vunpack.c.l.b16 %v424
        %v765 = vunpack.c.h.b16 %v424
        %v766 = vunpack.c.l.b16 %v425
        %v767 = vunpack.c.h.b16 %v425
        %v768 = vunpack.c.l.b16 %v426
        %v769 = vunpack.c.h.b16 %v426
        %v770 = vunpack.c.l.b16 %v427
        %v771 = vunpack.c.h.b16 %v427
        %v772 = vunpack.c.l.b16 %v428
        %v773 = vunpack.c.h.b16 %v428
        %v774 = vunpack.c.l.b16 %v429
        %v775 = vunpack.c.h.b16 %v429
        %v776 = vunpack.c.l.b16 %v430
        %v777 = vunpack.c.h.b16 %v430
        %v778 = vunpack.c.l.b16 %v431
        %v779 = vunpack.c.h.b16 %v431
        %v780 = vunpack.c.l.b16 %v432
        %v781 = vunpack.c.h.b16 %v432
        %v782 = vunpack.c.l.b16 %v433
        %v783 = vunpack.c.h.b16 %v433
        %v784 = vunpack.c.l.b16 %v434
        %v785 = vunpack.c.h.b16 %v434
        %v786 = vunpack.c.l.b16 %v435
        %v787 = vunpack.c.h.b16 %v435
        %v788 = vunpack.c.l.b16 %v436
        %v789 = vunpack.c.h.b16 %v436
        %v790 = vunpack.c.l.b16 %v437
        %v791 = vunpack.c.h.b16 %v437
        %v792 = vunpack.c.l.b16 %v438
        %v793 = vunpack.c.h.b16 %v438
        %v794 = vunpack.c.l.b16 %v439
        %v795 = vunpack.c.h.b16 %v439
        %v796 = vunpack.c.l.b16 %v440
        %v797 = vunpack.c.h.b16 %v440
        %v798 = vunpack.c.l.b16 %v441
        %v799 = vunpack.c.h.b16 %v441
        %v800 = vunpack.c.l.b16 %v442
        %v801 = vunpack.c.h.b16 %v442
        %v802 = vunpack.c.l.b16 %v443
        %v803 = vunpack.c.h.b16 %v443
        %v804 = vunpack.c.l.b16 %v444
        %v805 = vunpack.c.h.b16 %v444
        %v806 = vunpack.c.l.b16 %v445
        %v807 = vunpack.c.h.b16 %v445
        %v808 = vunpack.c.l.b16 %v446
        %v809 = vunpack.c.h.b16 %v446
        %v810 = vunpack.c.l.b16 %v447
        %v811 = vunpack.c.h.b16 %v447
        %v812 = vunpack.c.l.b16 %v448
        %v813 = vunpack.c.h.b16 %v448
        %v814 = vunpack.c.l.b16 %v449
        %v815 = vunpack.c.h.b16 %v449
        %v816 = vunpack.c.l.b16 %v450
        %v817 = vunpack.c.h.b16 %v450
        %v818 = vunpack.c.l.b16 %v451
        %v819 = vunpack.c.h.b16 %v451
        %v820 = vunpack.c.l.b16 %v452
        %v821 = vunpack.c.h.b16 %v452
        %v822 = vunpack.c.l.b16 %v453
        %v823 = vunpack.c.h.b16 %v453
        %v824 = vpack.c.b16 %v630, %v628
        %v825 = vpack.c.b16 %v631, %v629
        %v826 = vpack.c.b16 %v634, %v632
        %v827 = vpack.c.b16 %v635, %v633
        %v828 = vpack.c.b16 %v638, %v636
        %v829 = vpack.c.b16 %v639, %v637
        %v830 = vpack.c.b16 %v642, %v640
        %v831 = vpack.c.b16 %v643, %v641
        %v832 = vpack.c.b16 %v646, %v644
        %v833 = vpack.c.b16 %v647, %v645
        %v834 = vpack.c.b16 %v650, %v648
        %v835 = vpack.c.b16 %v651, %v649
        %v836 = vpack.c.b16 %v654, %v652
        %v837 = vpack.c.b16 %v655, %v653
        %v838 = vpack.c.b16 %v658, %v656
        %v839 = vpack.c.b16 %v659, %v657
        %v840 = vpack.c.b16 %v662, %v660
        %v841 = vpack.c.b16 %v663, %v661
        %v842 = vpack.c.b16 %v666, %v664
        %v843 = vpack.c.b16 %v667, %v665
        %v844 = vpack.c.b16 %v670, %v668
        %v845 = vpack.c.b16 %v671, %v669
        %v846 = vpack.c.b16 %v674, %v672
        %v847 = vpack.c.b16 %v675, %v673
        %v848 = vpack.c.b16 %v678, %v676
        %v849 = vpack.c.b16 %v679, %v677
        %v850 = vpack.c.b16 %v682, %v680
        %v851 = vpack.c.b16 %v683, %v681
        %v852 = vpack.c.b16 %v686, %v684
        %v853 = vpack.c.b16 %v687, %v685
        %v854 = vpack.c.b16 %v690, %v688
        %v855 = vpack.c.b16 %v691, %v689
        %v856 = vpack.c.b16 %v694, %v692
        %v857 = vpack.c.b16 %v695, %v693
        %v858 = vpack.c.b16 %v698, %v696
        %v859 = vpack.c.b16 %v699, %v697
        %v860 = vpack.c.b16 %v702, %v700
        %v861 = vpack.c.b16 %v703, %v701
        %v862 = vpack.c.b16 %v706, %v704
        %v863 = vpack.c.b16 %v707, %v705
        %v864 = vpack.c.b16 %v710, %v708
        %v865 = vpack.c.b16 %v711, %v709
        %v866 = vpack.c.b16 %v714, %v712
        %v867 = vpack.c.b16 %v715, %v713
        %v868 = vpack.c.b16 %v718, %v716
        %v869 = vpack.c.b16 %v719, %v717
        %v870 = vpack.c.b16 %v722, %v720
        %v871 = vpack.c.b16 %v723, %v721
        %v872 = vpack.c.b16 %v726, %v724
        %v873 = vpack.c.b16 %v727, %v725
        %v874 = vpack.c.b16 %v730, %v728
        %v875 = vpack.c.b16 %v731, %v729
        %v876 = vpack.c.b16 %v734, %v732
        %v877 = vpack.c.b16 %v735, %v733
        %v878 = vpack.c.b16 %v738, %v736
        %v879 = vpack.c.b16 %v739, %v737
        %v880 = vpack.c.b16 %v742, %v740
        %v881 = vpack.c.b16 %v743, %v741
        %v882 = vpack.c.b16 %v746, %v744
        %v883 = vpack.c.b16 %v747, %v745
        %v884 = vpack.c.b16 %v750, %v748
        %v885 = vpack.c.b16 %v751, %v749
        %v886 = vpack.c.b16 %v754, %v752
        %v887 = vpack.c.b16 %v755, %v753
        %v888 = vpack.c.b16 %v758, %v756
        %v889 = vpack.c.b16 %v759, %v757
        %v890 = vpack.c.b16 %v762, %v760
        %v891 = vpack.c.b16 %v763, %v761
        %v892 = vpack.c.b16 %v766, %v764
        %v893 = vpack.c.b16 %v767, %v765
        %v894 = vpack.c.b16 %v770, %v768
        %v895 = vpack.c.b16 %v771, %v769
        %v896 = vpack.c.b16 %v774, %v772
        %v897 = vpack.c.b16 %v775, %v773
        %v898 = vpack.c.b16 %v778, %v776
        %v899 = vpack.c.b16 %v779, %v777
        %v900 = vpack.c.b16 %v782, %v780
        %v901 = vpack.c.b16 %v783, %v781
        %v902 = vpack.c.b16 %v786, %v784
        %v903 = vpack.c.b16 %v787, %v785
        %v904 = vpack.c.b16 %v790, %v788
        %v905 = vpack.c.b16 %v791, %v789
        %v906 = vpack.c.b16 %v794, %v792
        %v907 = vpack.c.b16 %v795, %v793
        %v908 = vpack.c.b16 %v798, %v796
        %v909 = vpack.c.b16 %v799, %v797
        %v910 = vpack.c.b16 %v802, %v800
        %v911 = vpack.c.b16 %v803, %v801
        %v912 = vpack.c.b16 %v806, %v804
        %v913 = vpack.c.b16 %v807, %v805
        %v914 = vpack.c.b16 %v810, %v808
        %v915 = vpack.c.b16 %v811, %v809
        %v916 = vpack.c.b16 %v814, %v812
        %v917 = vpack.c.b16 %v815, %v813
        %v918 = vpack.c.b16 %v818, %v816
        %v919 = vpack.c.b16 %v819, %v817
        %v920 = vpack.c.b16 %v822, %v820
        %v921 = vpack.c.b16 %v823, %v821
        %vm1020 = vcmask 130048
        %v1022 = vsel %vm1020, %v510, 0
        %v1025 = vsel %vm1020, %v517, 0
        %1027 = vmatpush.bf16.msra.mxu0 %v838
        %1028 = vmatpush.bf16.msra.mxu0 %v836
        %1029 = vmatpush.bf16.msra.mxu0 %v834
        %1030 = vmatpush.bf16.msra.mxu0 %v832
        %1031 = vmatpush.bf16.msra.mxu0 %v830
        %1032 = vmatpush.bf16.msra.mxu0 %v828
        %1033 = vmatpush.bf16.msra.mxu0 %v826
        %1034 = vmatpush.bf16.msra.mxu0 %v824
        %1035 = vmatmul.bf16.gmra.mxu0 %v504
        %v1036 = vpop.f32.mrf.mxu0
        %v1037 = vadd.f32 %v456, %v1036
        %v1038 = vpop.f32.mrf.mxu0
        %v1039 = vadd.f32 %v456, %v1038
        %1040 = vmatmul.bf16.gmra.mxu0 %v511
        %v1041 = vpop.f32.mrf.mxu0
        %v1042 = vadd.f32 %v456, %v1041
        %v1043 = vpop.f32.mrf.mxu0
        %v1044 = vadd.f32 %v456, %v1043
        %1045 = vdwg.mxu0
        %1046 = vmatpush.bf16.msra.mxu0 %v854
        %1047 = vmatpush.bf16.msra.mxu0 %v852
        %1048 = vmatpush.bf16.msra.mxu0 %v850
        %1049 = vmatpush.bf16.msra.mxu0 %v848
        %1050 = vmatpush.bf16.msra.mxu0 %v846
        %1051 = vmatpush.bf16.msra.mxu0 %v844
        %1052 = vmatpush.bf16.msra.mxu0 %v842
        %1053 = vmatpush.bf16.msra.mxu0 %v840
        %1054 = vmatmul.bf16.gmra.mxu0 %v505
        %v1055 = vpop.f32.mrf.mxu0
        %v1056 = vadd.f32 %v1037, %v1055
        %v1057 = vpop.f32.mrf.mxu0
        %v1058 = vadd.f32 %v1039, %v1057
        %1059 = vmatmul.bf16.gmra.mxu0 %v512
        %v1060 = vpop.f32.mrf.mxu0
        %v1061 = vadd.f32 %v1042, %v1060
        %v1062 = vpop.f32.mrf.mxu0
        %v1063 = vadd.f32 %v1044, %v1062
        %1064 = vdwg.mxu0
        %1065 = vmatpush.bf16.msra.mxu0 %v870
        %1066 = vmatpush.bf16.msra.mxu0 %v868
        %1067 = vmatpush.bf16.msra.mxu0 %v866
        %1068 = vmatpush.bf16.msra.mxu0 %v864
        %1069 = vmatpush.bf16.msra.mxu0 %v862
        %1070 = vmatpush.bf16.msra.mxu0 %v860
        %1071 = vmatpush.bf16.msra.mxu0 %v858
        %1072 = vmatpush.bf16.msra.mxu0 %v856
        %1073 = vmatmul.bf16.gmra.mxu0 %v506
        %v1074 = vpop.f32.mrf.mxu0
        %v1075 = vadd.f32 %v1056, %v1074
        %v1076 = vpop.f32.mrf.mxu0
        %v1077 = vadd.f32 %v1058, %v1076
        %1078 = vmatmul.bf16.gmra.mxu0 %v513
        %v1079 = vpop.f32.mrf.mxu0
        %v1080 = vadd.f32 %v1061, %v1079
        %v1081 = vpop.f32.mrf.mxu0
        %v1082 = vadd.f32 %v1063, %v1081
        %1083 = vdwg.mxu0
        %1084 = vmatpush.bf16.msra.mxu0 %v886
        %1085 = vmatpush.bf16.msra.mxu0 %v884
        %1086 = vmatpush.bf16.msra.mxu0 %v882
        %1087 = vmatpush.bf16.msra.mxu0 %v880
        %1088 = vmatpush.bf16.msra.mxu0 %v878
        %1089 = vmatpush.bf16.msra.mxu0 %v876
        %1090 = vmatpush.bf16.msra.mxu0 %v874
        %1091 = vmatpush.bf16.msra.mxu0 %v872
        %1092 = vmatmul.bf16.gmra.mxu0 %v507
        %v1093 = vpop.f32.mrf.mxu0
        %v1094 = vadd.f32 %v1075, %v1093
        %v1095 = vpop.f32.mrf.mxu0
        %v1096 = vadd.f32 %v1077, %v1095
        %1097 = vmatmul.bf16.gmra.mxu0 %v514
        %v1098 = vpop.f32.mrf.mxu0
        %v1099 = vadd.f32 %v1080, %v1098
        %v1100 = vpop.f32.mrf.mxu0
        %v1101 = vadd.f32 %v1082, %v1100
        %1102 = vdwg.mxu0
        %1103 = vmatpush.bf16.msra.mxu0 %v902
        %1104 = vmatpush.bf16.msra.mxu0 %v900
        %1105 = vmatpush.bf16.msra.mxu0 %v898
        %1106 = vmatpush.bf16.msra.mxu0 %v896
        %1107 = vmatpush.bf16.msra.mxu0 %v894
        %1108 = vmatpush.bf16.msra.mxu0 %v892
        %1109 = vmatpush.bf16.msra.mxu0 %v890
        %1110 = vmatpush.bf16.msra.mxu0 %v888
        %1111 = vmatmul.bf16.gmra.mxu0 %v508
        %v1112 = vpop.f32.mrf.mxu0
        %v1113 = vadd.f32 %v1094, %v1112
        %v1114 = vpop.f32.mrf.mxu0
        %v1115 = vadd.f32 %v1096, %v1114
        %1116 = vmatmul.bf16.gmra.mxu0 %v515
        %v1117 = vpop.f32.mrf.mxu0
        %v1118 = vadd.f32 %v1099, %v1117
        %v1119 = vpop.f32.mrf.mxu0
        %v1120 = vadd.f32 %v1101, %v1119
        %1121 = vdwg.mxu0
        %1122 = vmatpush.bf16.msra.mxu0 %v918
        %1123 = vmatpush.bf16.msra.mxu0 %v916
        %1124 = vmatpush.bf16.msra.mxu0 %v914
        %1125 = vmatpush.bf16.msra.mxu0 %v912
        %1126 = vmatpush.bf16.msra.mxu0 %v910
        %1127 = vmatpush.bf16.msra.mxu0 %v908
        %1128 = vmatpush.bf16.msra.mxu0 %v906
        %1129 = vmatpush.bf16.msra.mxu0 %v904
        %1130 = vmatmul.bf16.gmra.mxu0 %v509
        %v1131 = vpop.f32.mrf.mxu0
        %v1132 = vadd.f32 %v1113, %v1131
        %v1133 = vpop.f32.mrf.mxu0
        %v1134 = vadd.f32 %v1115, %v1133
        %1135 = vmatmul.bf16.gmra.mxu0 %v516
        %v1136 = vpop.f32.mrf.mxu0
        %v1137 = vadd.f32 %v1118, %v1136
        %v1138 = vpop.f32.mrf.mxu0
        %v1139 = vadd.f32 %v1120, %v1138
        %1140 = vdwg.mxu0
        %1141 = vmatpush.bf16.msra.mxu0 0
        %1142 = vmatpush.bf16.msra.mxu0 0
        %1143 = vmatpush.bf16.msra.mxu0 0
        %1144 = vmatpush.bf16.msra.mxu0 0
        %1145 = vmatpush.bf16.msra.mxu0 0
        %1146 = vmatpush.bf16.msra.mxu0 0
        %1147 = vmatpush.bf16.msra.mxu0 0
        %1148 = vmatpush.bf16.msra.mxu0 %v920
        %1149 = vmatmul.bf16.gmra.mxu0 %v1022
        %v1150 = vpop.f32.mrf.mxu0
        %v1151 = vadd.f32 %v1132, %v1150
        %v1152 = vpop.f32.mrf.mxu0
        %v1153 = vadd.f32 %v1134, %v1152
        %1154 = vmatmul.bf16.gmra.mxu0 %v1025
        %v1155 = vpop.f32.mrf.mxu0
        %v1156 = vadd.f32 %v1137, %v1155
        %v1157 = vpop.f32.mrf.mxu0
        %v1158 = vadd.f32 %v1139, %v1157
        %1159 = vdwg.mxu0
        %1160 = vmatpush.bf16.msra.mxu0 %v839
        %1161 = vmatpush.bf16.msra.mxu0 %v837
        %1162 = vmatpush.bf16.msra.mxu0 %v835
        %1163 = vmatpush.bf16.msra.mxu0 %v833
        %1164 = vmatpush.bf16.msra.mxu0 %v831
        %1165 = vmatpush.bf16.msra.mxu0 %v829
        %1166 = vmatpush.bf16.msra.mxu0 %v827
        %1167 = vmatpush.bf16.msra.mxu0 %v825
        %1168 = vmatmul.bf16.gmra.mxu0 %v504
        %v1169 = vpop.f32.mrf.mxu0
        %v1170 = vadd.f32 %v457, %v1169
        %v1171 = vpop.f32.mrf.mxu0
        %v1172 = vadd.f32 %v457, %v1171
        %1173 = vmatmul.bf16.gmra.mxu0 %v511
        %v1174 = vpop.f32.mrf.mxu0
        %v1175 = vadd.f32 %v457, %v1174
        %v1176 = vpop.f32.mrf.mxu0
        %v1177 = vadd.f32 %v457, %v1176
        %1178 = vdwg.mxu0
        %1179 = vmatpush.bf16.msra.mxu0 %v855
        %1180 = vmatpush.bf16.msra.mxu0 %v853
        %1181 = vmatpush.bf16.msra.mxu0 %v851
        %1182 = vmatpush.bf16.msra.mxu0 %v849
        %1183 = vmatpush.bf16.msra.mxu0 %v847
        %1184 = vmatpush.bf16.msra.mxu0 %v845
        %1185 = vmatpush.bf16.msra.mxu0 %v843
        %1186 = vmatpush.bf16.msra.mxu0 %v841
        %1187 = vmatmul.bf16.gmra.mxu0 %v505
        %v1188 = vpop.f32.mrf.mxu0
        %v1189 = vadd.f32 %v1170, %v1188
        %v1190 = vpop.f32.mrf.mxu0
        %v1191 = vadd.f32 %v1172, %v1190
        %1192 = vmatmul.bf16.gmra.mxu0 %v512
        %v1193 = vpop.f32.mrf.mxu0
        %v1194 = vadd.f32 %v1175, %v1193
        %v1195 = vpop.f32.mrf.mxu0
        %v1196 = vadd.f32 %v1177, %v1195
        %1197 = vdwg.mxu0
        %1198 = vmatpush.bf16.msra.mxu0 %v871
        %1199 = vmatpush.bf16.msra.mxu0 %v869
        %1200 = vmatpush.bf16.msra.mxu0 %v867
        %1201 = vmatpush.bf16.msra.mxu0 %v865
        %1202 = vmatpush.bf16.msra.mxu0 %v863
        %1203 = vmatpush.bf16.msra.mxu0 %v861
        %1204 = vmatpush.bf16.msra.mxu0 %v859
        %1205 = vmatpush.bf16.msra.mxu0 %v857
        %1206 = vmatmul.bf16.gmra.mxu0 %v506
        %v1207 = vpop.f32.mrf.mxu0
        %v1208 = vadd.f32 %v1189, %v1207
        %v1209 = vpop.f32.mrf.mxu0
        %v1210 = vadd.f32 %v1191, %v1209
        %1211 = vmatmul.bf16.gmra.mxu0 %v513
        %v1212 = vpop.f32.mrf.mxu0
        %v1213 = vadd.f32 %v1194, %v1212
        %v1214 = vpop.f32.mrf.mxu0
        %v1215 = vadd.f32 %v1196, %v1214
        %1216 = vdwg.mxu0
        %1217 = vmatpush.bf16.msra.mxu0 %v887
        %1218 = vmatpush.bf16.msra.mxu0 %v885
        %1219 = vmatpush.bf16.msra.mxu0 %v883
        %1220 = vmatpush.bf16.msra.mxu0 %v881
        %1221 = vmatpush.bf16.msra.mxu0 %v879
        %1222 = vmatpush.bf16.msra.mxu0 %v877
        %1223 = vmatpush.bf16.msra.mxu0 %v875
        %1224 = vmatpush.bf16.msra.mxu0 %v873
        %1225 = vmatmul.bf16.gmra.mxu0 %v507
        %v1226 = vpop.f32.mrf.mxu0
        %v1227 = vadd.f32 %v1208, %v1226
        %v1228 = vpop.f32.mrf.mxu0
        %v1229 = vadd.f32 %v1210, %v1228
        %1230 = vmatmul.bf16.gmra.mxu0 %v514
        %v1231 = vpop.f32.mrf.mxu0
        %v1232 = vadd.f32 %v1213, %v1231
        %v1233 = vpop.f32.mrf.mxu0
        %v1234 = vadd.f32 %v1215, %v1233
        %1235 = vdwg.mxu0
        %1236 = vmatpush.bf16.msra.mxu0 %v903
        %1237 = vmatpush.bf16.msra.mxu0 %v901
        %1238 = vmatpush.bf16.msra.mxu0 %v899
        %1239 = vmatpush.bf16.msra.mxu0 %v897
        %1240 = vmatpush.bf16.msra.mxu0 %v895
        %1241 = vmatpush.bf16.msra.mxu0 %v893
        %1242 = vmatpush.bf16.msra.mxu0 %v891
        %1243 = vmatpush.bf16.msra.mxu0 %v889
        %1244 = vmatmul.bf16.gmra.mxu0 %v508
        %v1245 = vpop.f32.mrf.mxu0
        %v1246 = vadd.f32 %v1227, %v1245
        %v1247 = vpop.f32.mrf.mxu0
        %v1248 = vadd.f32 %v1229, %v1247
        %1249 = vmatmul.bf16.gmra.mxu0 %v515
        %v1250 = vpop.f32.mrf.mxu0
        %v1251 = vadd.f32 %v1232, %v1250
        %v1252 = vpop.f32.mrf.mxu0
        %v1253 = vadd.f32 %v1234, %v1252
        %1254 = vdwg.mxu0
        %1255 = vmatpush.bf16.msra.mxu0 %v919
        %1256 = vmatpush.bf16.msra.mxu0 %v917
        %1257 = vmatpush.bf16.msra.mxu0 %v915
        %1258 = vmatpush.bf16.msra.mxu0 %v913
        %1259 = vmatpush.bf16.msra.mxu0 %v911
        %1260 = vmatpush.bf16.msra.mxu0 %v909
        %1261 = vmatpush.bf16.msra.mxu0 %v907
        %1262 = vmatpush.bf16.msra.mxu0 %v905
        %1263 = vmatmul.bf16.gmra.mxu0 %v509
        %v1264 = vpop.f32.mrf.mxu0
        %v1265 = vadd.f32 %v1246, %v1264
        %v1266 = vpop.f32.mrf.mxu0
        %v1267 = vadd.f32 %v1248, %v1266
        %1268 = vmatmul.bf16.gmra.mxu0 %v516
        %v1269 = vpop.f32.mrf.mxu0
        %v1270 = vadd.f32 %v1251, %v1269
        %v1271 = vpop.f32.mrf.mxu0
        %v1272 = vadd.f32 %v1253, %v1271
        %1273 = vdwg.mxu0
        %1274 = vmatpush.bf16.msra.mxu0 0
        %1275 = vmatpush.bf16.msra.mxu0 0
        %1276 = vmatpush.bf16.msra.mxu0 0
        %1277 = vmatpush.bf16.msra.mxu0 0
        %1278 = vmatpush.bf16.msra.mxu0 0
        %1279 = vmatpush.bf16.msra.mxu0 0
        %1280 = vmatpush.bf16.msra.mxu0 0
        %1281 = vmatpush.bf16.msra.mxu0 %v921
        %1282 = vmatmul.bf16.gmra.mxu0 %v1022
        %v1283 = vpop.f32.mrf.mxu0
        %v1284 = vadd.f32 %v1265, %v1283
        %v1285 = vpop.f32.mrf.mxu0
        %v1286 = vadd.f32 %v1267, %v1285
        %1287 = vmatmul.bf16.gmra.mxu0 %v1025
        %v1288 = vpop.f32.mrf.mxu0
        %v1289 = vadd.f32 %v1270, %v1288
        %v1290 = vpop.f32.mrf.mxu0
        %v1291 = vadd.f32 %v1272, %v1290
        %1292 = vdwg.mxu0
        %vm1293 = vcmp.gt.f32.partialorder %v1151, 0.0
        %vm1294 = vcmp.gt.f32.partialorder %v1284, 0.0
        %vm1295 = vcmp.gt.f32.partialorder %v1153, 0.0
        %vm1296 = vcmp.gt.f32.partialorder %v1286, 0.0
        %vm1297 = vcmp.gt.f32.partialorder %v1156, 0.0
        %vm1298 = vcmp.gt.f32.partialorder %v1289, 0.0
        %vm1299 = vcmp.gt.f32.partialorder %v1158, 0.0
        %vm1300 = vcmp.gt.f32.partialorder %v1291, 0.0
        %v1301 = vmul.f32 %v1151, 0.2
        %v1302 = vmul.f32 %v1284, 0.2
        %v1303 = vmul.f32 %v1153, 0.2
        %v1304 = vmul.f32 %v1286, 0.2
        %v1305 = vmul.f32 %v1156, 0.2
        %v1306 = vmul.f32 %v1289, 0.2
        %v1307 = vmul.f32 %v1158, 0.2
        %v1308 = vmul.f32 %v1291, 0.2
        %v1309 = vsel %vm1293, %v1151, %v1301
        %v1310 = vsel %vm1294, %v1284, %v1302
        %v1311 = vsel %vm1295, %v1153, %v1303
        %v1312 = vsel %vm1296, %v1286, %v1304
        %v1313 = vsel %vm1297, %v1156, %v1305
        %v1314 = vsel %vm1298, %v1289, %v1306
        %v1315 = vsel %vm1299, %v1158, %v1307
        %v1316 = vsel %vm1300, %v1291, %v1308
        %v1317 = vpack.c.bf16 %v1311, %v1309
        %v1318 = vpack.c.bf16 %v1312, %v1310
        %v1319 = vpack.c.bf16 %v1315, %v1313
        %v1320 = vpack.c.bf16 %v1316, %v1314
        %v1321 = vld [vmem:[#allocation7] sm:$0xff]
        %v1322 = vld [vmem:[#allocation7 + $0x8] sm:$0xff]
        %v1323 = vld [vmem:[#allocation7 + $0x10] sm:$0xff]
        %v1324 = vld [vmem:[#allocation7 + $0x18] sm:$0xff]
        %v1325 = vld [vmem:[#allocation7 + $0x20] sm:$0xff]
        %v1326 = vld [vmem:[#allocation7 + $0x28] sm:$0xff]
        %v1327 = vld [vmem:[#allocation7 + $0x30] sm:$0xff]
        %v1328 = vld [vmem:[#allocation7 + $0x38] sm:$0xff]
        %v1329 = vld [vmem:[#allocation7 + $0x40] sm:$0xff]
        %v1330 = vld [vmem:[#allocation7 + $0x48] sm:$0xff]
        %v1331 = vld [vmem:[#allocation7 + $0x50] sm:$0xff]
        %v1332 = vld [vmem:[#allocation7 + $0x58] sm:$0xff]
        %v1333 = vld [vmem:[#allocation7 + $0x60] sm:$0xff]
        %v1334 = vld [vmem:[#allocation7 + $0x68] sm:$0xff]
        %v1335 = vld [vmem:[#allocation7 + $0x70] sm:$0xff]
        %v1336 = vld [vmem:[#allocation7 + $0x78] sm:$0xff]
        %v1337 = vld [vmem:[#allocation7 + $0x80] sm:$0xff]
        %v1338 = vld [vmem:[#allocation7 + $0x88] sm:$0xff]
        %v1339 = vld [vmem:[#allocation7 + $0x90] sm:$0xff]
        %v1340 = vld [vmem:[#allocation7 + $0x98] sm:$0xff]
        %v1341 = vld [vmem:[#allocation7 + $0xa0] sm:$0xff]
        %v1342 = vld [vmem:[#allocation7 + $0xa8] sm:$0xff]
        %v1343 = vld [vmem:[#allocation7 + $0xb0] sm:$0xff]
        %v1344 = vld [vmem:[#allocation7 + $0xb8] sm:$0xff]
        %v1345 = vld [vmem:[#allocation7 + $0xc0] sm:$0xff]
        %v1346 = vld [vmem:[#allocation7 + $0xc8] sm:$0xff]
        %v1347 = vld [vmem:[#allocation7 + $0xd0] sm:$0xff]
        %v1348 = vld [vmem:[#allocation7 + $0xd8] sm:$0xff]
        %v1349 = vld [vmem:[#allocation7 + $0xe0] sm:$0xff]
        %v1350 = vld [vmem:[#allocation7 + $0xe8] sm:$0xff]
        %v1351 = vld [vmem:[#allocation7 + $0xf0] sm:$0xff]
        %v1352 = vld [vmem:[#allocation7 + $0xf8] sm:$0xff]
        %v1353 = vld [vmem:[%s4] sm:$0x3]
        %v1355 = vperm.slane %v1353, 0
        %v1356 = vperm.slane %v1353, 1
        %v1391 = vunpack.c.l.b16 %v1321
        %v1392 = vunpack.c.h.b16 %v1321
        %v1393 = vunpack.c.l.b16 %v1322
        %v1394 = vunpack.c.h.b16 %v1322
        %v1395 = vunpack.c.l.b16 %v1323
        %v1396 = vunpack.c.h.b16 %v1323
        %v1397 = vunpack.c.l.b16 %v1324
        %v1398 = vunpack.c.h.b16 %v1324
        %v1399 = vunpack.c.l.b16 %v1325
        %v1400 = vunpack.c.h.b16 %v1325
        %v1401 = vunpack.c.l.b16 %v1326
        %v1402 = vunpack.c.h.b16 %v1326
        %v1403 = vunpack.c.l.b16 %v1327
        %v1404 = vunpack.c.h.b16 %v1327
        %v1405 = vunpack.c.l.b16 %v1328
        %v1406 = vunpack.c.h.b16 %v1328
        %v1407 = vunpack.c.l.b16 %v1329
        %v1408 = vunpack.c.h.b16 %v1329
        %v1409 = vunpack.c.l.b16 %v1330
        %v1410 = vunpack.c.h.b16 %v1330
        %v1411 = vunpack.c.l.b16 %v1331
        %v1412 = vunpack.c.h.b16 %v1331
        %v1413 = vunpack.c.l.b16 %v1332
        %v1414 = vunpack.c.h.b16 %v1332
        %v1415 = vunpack.c.l.b16 %v1333
        %v1416 = vunpack.c.h.b16 %v1333
        %v1417 = vunpack.c.l.b16 %v1334
        %v1418 = vunpack.c.h.b16 %v1334
        %v1419 = vunpack.c.l.b16 %v1335
        %v1420 = vunpack.c.h.b16 %v1335
        %v1421 = vunpack.c.l.b16 %v1336
        %v1422 = vunpack.c.h.b16 %v1336
        %v1423 = vunpack.c.l.b16 %v1337
        %v1424 = vunpack.c.h.b16 %v1337
        %v1425 = vunpack.c.l.b16 %v1338
        %v1426 = vunpack.c.h.b16 %v1338
        %v1427 = vunpack.c.l.b16 %v1339
        %v1428 = vunpack.c.h.b16 %v1339
        %v1429 = vunpack.c.l.b16 %v1340
        %v1430 = vunpack.c.h.b16 %v1340
        %v1431 = vunpack.c.l.b16 %v1341
        %v1432 = vunpack.c.h.b16 %v1341
        %v1433 = vunpack.c.l.b16 %v1342
        %v1434 = vunpack.c.h.b16 %v1342
        %v1435 = vunpack.c.l.b16 %v1343
        %v1436 = vunpack.c.h.b16 %v1343
        %v1437 = vunpack.c.l.b16 %v1344
        %v1438 = vunpack.c.h.b16 %v1344
        %v1439 = vunpack.c.l.b16 %v1345
        %v1440 = vunpack.c.h.b16 %v1345
        %v1441 = vunpack.c.l.b16 %v1346
        %v1442 = vunpack.c.h.b16 %v1346
        %v1443 = vunpack.c.l.b16 %v1347
        %v1444 = vunpack.c.h.b16 %v1347
        %v1445 = vunpack.c.l.b16 %v1348
        %v1446 = vunpack.c.h.b16 %v1348
        %v1447 = vunpack.c.l.b16 %v1349
        %v1448 = vunpack.c.h.b16 %v1349
        %v1449 = vunpack.c.l.b16 %v1350
        %v1450 = vunpack.c.h.b16 %v1350
        %v1451 = vunpack.c.l.b16 %v1351
        %v1452 = vunpack.c.h.b16 %v1351
        %v1453 = vunpack.c.l.b16 %v1352
        %v1454 = vunpack.c.h.b16 %v1352
        %v1455 = vpack.c.b16 %v1393, %v1391
        %v1456 = vpack.c.b16 %v1394, %v1392
        %v1457 = vpack.c.b16 %v1397, %v1395
        %v1458 = vpack.c.b16 %v1398, %v1396
        %v1459 = vpack.c.b16 %v1401, %v1399
        %v1460 = vpack.c.b16 %v1402, %v1400
        %v1461 = vpack.c.b16 %v1405, %v1403
        %v1462 = vpack.c.b16 %v1406, %v1404
        %v1463 = vpack.c.b16 %v1409, %v1407
        %v1464 = vpack.c.b16 %v1410, %v1408
        %v1465 = vpack.c.b16 %v1413, %v1411
        %v1466 = vpack.c.b16 %v1414, %v1412
        %v1467 = vpack.c.b16 %v1417, %v1415
        %v1468 = vpack.c.b16 %v1418, %v1416
        %v1469 = vpack.c.b16 %v1421, %v1419
        %v1470 = vpack.c.b16 %v1422, %v1420
        %v1471 = vpack.c.b16 %v1425, %v1423
        %v1472 = vpack.c.b16 %v1426, %v1424
        %v1473 = vpack.c.b16 %v1429, %v1427
        %v1474 = vpack.c.b16 %v1430, %v1428
        %v1475 = vpack.c.b16 %v1433, %v1431
        %v1476 = vpack.c.b16 %v1434, %v1432
        %v1477 = vpack.c.b16 %v1437, %v1435
        %v1478 = vpack.c.b16 %v1438, %v1436
        %v1479 = vpack.c.b16 %v1441, %v1439
        %v1480 = vpack.c.b16 %v1442, %v1440
        %v1481 = vpack.c.b16 %v1445, %v1443
        %v1482 = vpack.c.b16 %v1446, %v1444
        %v1483 = vpack.c.b16 %v1449, %v1447
        %v1484 = vpack.c.b16 %v1450, %v1448
        %v1485 = vpack.c.b16 %v1453, %v1451
        %v1486 = vpack.c.b16 %v1454, %v1452
        %1519 = vmatpush.bf16.msra.mxu0 %v1469
        %1520 = vmatpush.bf16.msra.mxu0 %v1467
        %1521 = vmatpush.bf16.msra.mxu0 %v1465
        %1522 = vmatpush.bf16.msra.mxu0 %v1463
        %1523 = vmatpush.bf16.msra.mxu0 %v1461
        %1524 = vmatpush.bf16.msra.mxu0 %v1459
        %1525 = vmatpush.bf16.msra.mxu0 %v1457
        %1526 = vmatpush.bf16.msra.mxu0 %v1455
        %1527 = vmatmul.bf16.gmra.mxu0 %v1317
        %v1528 = vpop.f32.mrf.mxu0
        %v1529 = vadd.f32 %v1355, %v1528
        %v1530 = vpop.f32.mrf.mxu0
        %v1531 = vadd.f32 %v1355, %v1530
        %1532 = vmatmul.bf16.gmra.mxu0 %v1319
        %v1533 = vpop.f32.mrf.mxu0
        %v1534 = vadd.f32 %v1355, %v1533
        %v1535 = vpop.f32.mrf.mxu0
        %v1536 = vadd.f32 %v1355, %v1535
        %1537 = vdwg.mxu0
        %1538 = vmatpush.bf16.msra.mxu0 %v1485
        %1539 = vmatpush.bf16.msra.mxu0 %v1483
        %1540 = vmatpush.bf16.msra.mxu0 %v1481
        %1541 = vmatpush.bf16.msra.mxu0 %v1479
        %1542 = vmatpush.bf16.msra.mxu0 %v1477
        %1543 = vmatpush.bf16.msra.mxu0 %v1475
        %1544 = vmatpush.bf16.msra.mxu0 %v1473
        %1545 = vmatpush.bf16.msra.mxu0 %v1471
        %1546 = vmatmul.bf16.gmra.mxu0 %v1318
        %v1547 = vpop.f32.mrf.mxu0
        %v1548 = vadd.f32 %v1529, %v1547
        %v1549 = vpop.f32.mrf.mxu0
        %v1550 = vadd.f32 %v1531, %v1549
        %1551 = vmatmul.bf16.gmra.mxu0 %v1320
        %v1552 = vpop.f32.mrf.mxu0
        %v1553 = vadd.f32 %v1534, %v1552
        %v1554 = vpop.f32.mrf.mxu0
        %v1555 = vadd.f32 %v1536, %v1554
        %1556 = vdwg.mxu0
        %1557 = vmatpush.bf16.msra.mxu0 %v1470
        %1558 = vmatpush.bf16.msra.mxu0 %v1468
        %1559 = vmatpush.bf16.msra.mxu0 %v1466
        %1560 = vmatpush.bf16.msra.mxu0 %v1464
        %1561 = vmatpush.bf16.msra.mxu0 %v1462
        %1562 = vmatpush.bf16.msra.mxu0 %v1460
        %1563 = vmatpush.bf16.msra.mxu0 %v1458
        %1564 = vmatpush.bf16.msra.mxu0 %v1456
        %1565 = vmatmul.bf16.gmra.mxu0 %v1317
        %v1566 = vpop.f32.mrf.mxu0
        %v1567 = vadd.f32 %v1356, %v1566
        %v1568 = vpop.f32.mrf.mxu0
        %v1569 = vadd.f32 %v1356, %v1568
        %1570 = vmatmul.bf16.gmra.mxu0 %v1319
        %v1571 = vpop.f32.mrf.mxu0
        %v1572 = vadd.f32 %v1356, %v1571
        %v1573 = vpop.f32.mrf.mxu0
        %v1574 = vadd.f32 %v1356, %v1573
        %1575 = vdwg.mxu0
        %1576 = vmatpush.bf16.msra.mxu0 %v1486
        %1577 = vmatpush.bf16.msra.mxu0 %v1484
        %1578 = vmatpush.bf16.msra.mxu0 %v1482
        %1579 = vmatpush.bf16.msra.mxu0 %v1480
        %1580 = vmatpush.bf16.msra.mxu0 %v1478
        %1581 = vmatpush.bf16.msra.mxu0 %v1476
        %1582 = vmatpush.bf16.msra.mxu0 %v1474
        %1583 = vmatpush.bf16.msra.mxu0 %v1472
        %1584 = vmatmul.bf16.gmra.mxu0 %v1318
        %v1585 = vpop.f32.mrf.mxu0
        %v1586 = vadd.f32 %v1567, %v1585
        %v1587 = vpop.f32.mrf.mxu0
        %v1588 = vadd.f32 %v1569, %v1587
        %1589 = vmatmul.bf16.gmra.mxu0 %v1320
        %v1590 = vpop.f32.mrf.mxu0
        %v1591 = vadd.f32 %v1572, %v1590
        %v1592 = vpop.f32.mrf.mxu0
        %v1593 = vadd.f32 %v1574, %v1592
        %1594 = vdwg.mxu0
        %vm1595 = vcmp.gt.f32.partialorder %v1548, 0.0
        %vm1596 = vcmp.gt.f32.partialorder %v1586, 0.0
        %vm1597 = vcmp.gt.f32.partialorder %v1550, 0.0
        %vm1598 = vcmp.gt.f32.partialorder %v1588, 0.0
        %vm1599 = vcmp.gt.f32.partialorder %v1553, 0.0
        %vm1600 = vcmp.gt.f32.partialorder %v1591, 0.0
        %vm1601 = vcmp.gt.f32.partialorder %v1555, 0.0
        %vm1602 = vcmp.gt.f32.partialorder %v1593, 0.0
        %v1603 = vmul.f32 %v1548, 0.2
        %v1604 = vmul.f32 %v1586, 0.2
        %v1605 = vmul.f32 %v1550, 0.2
        %v1606 = vmul.f32 %v1588, 0.2
        %v1607 = vmul.f32 %v1553, 0.2
        %v1608 = vmul.f32 %v1591, 0.2
        %v1609 = vmul.f32 %v1555, 0.2
        %v1610 = vmul.f32 %v1593, 0.2
        %v1611 = vsel %vm1595, %v1548, %v1603
        %v1612 = vsel %vm1596, %v1586, %v1604
        %v1613 = vsel %vm1597, %v1550, %v1605
        %v1614 = vsel %vm1598, %v1588, %v1606
        %v1615 = vsel %vm1599, %v1553, %v1607
        %v1616 = vsel %vm1600, %v1591, %v1608
        %v1617 = vsel %vm1601, %v1555, %v1609
        %v1618 = vsel %vm1602, %v1593, %v1610
        %v1619 = vld [vmem:[%s5] sm:$0x3]
        %v1621 = vperm.slane %v1619, 0
        %v1622 = vperm.slane %v1619, 1
        %v1625 = vmul.f32 %v1611, %v1621
        %v1626 = vmul.f32 %v1612, %v1622
        %v1627 = vmul.f32 %v1613, %v1621
        %v1628 = vmul.f32 %v1614, %v1622
        %v1629 = vmul.f32 %v1615, %v1621
        %v1630 = vmul.f32 %v1616, %v1622
        %v1631 = vmul.f32 %v1617, %v1621
        %v1632 = vmul.f32 %v1618, %v1622
        %v1633 = vadd.f32 %v1625, %v1626
        %1634 = vadd.xlane.f32.xlu0 %v1633
        %v1635 = vpop.xlane.xlu0 %1634
        %v1636 = vadd.f32 %v1627, %v1628
        %1637 = vadd.xlane.f32.xlu0 %v1636
        %v1638 = vpop.xlane.xlu0 %1637
        %v1639 = vadd.f32 %v1629, %v1630
        %1640 = vadd.xlane.f32.xlu0 %v1639
        %v1641 = vpop.xlane.xlu0 %1640
        %v1642 = vadd.f32 %v1631, %v1632
        %1643 = vadd.xlane.f32.xlu0 %v1642
        %v1644 = vpop.xlane.xlu0 %1643
        %v1645 = vld [vmem:[#allocation2] sm:$0x1]
        %v1647 = vperm.slane %v1645, 0
        %v1649 = vadd.f32 %v1635, %v1647
        %v1650 = vadd.f32 %v1638, %v1647
        %v1651 = vadd.f32 %v1641, %v1647
        %v1652 = vadd.f32 %v1644, %v1647
        %vm1653 = vcmask 7168
        %1654 = vst.msk [vmem:[%s337] sm:$0xff] %vm1653, %v1649
        %1655 = vst.msk [vmem:[%s337 + $0x8] sm:$0xff] %vm1653, %v1650
        %1656 = vst.msk [vmem:[%s337 + $0x10] sm:$0xff] %vm1653, %v1651
        %1657 = vst.msk [vmem:[%s337 + $0x18] sm:$0xff] %vm1653, %v1652
        %s1658 = smul.u32 4, %s24
        %p1659 = scmp.lt.s32.totalorder %s1658, 7
        %s1660 = scalar_select %p1659, %s1658, 7
        %s1661 = smul.addr %s1660, 8
        %s1662 = scalar_lea.vmem %s7, %s1661
        // Predicated region
        $region61: #{tpu_custom_call.1} parent=47 // pred_check
          %p1663 = pneg %p194
        $region62: #{tpu_custom_call.1} parent=47 // pred_check_branch
          %1665 = sbr.rel (%p1663) target = $region64
        $region63: #{tpu_custom_call.1} parent=47 // pred_region
          %s1666 = smul.u32 4, %s24
        $region64: #{tpu_custom_call.1} parent=47 // pred_fallthru
          _
      $region48: #{tpu_custom_call.1} parent=5 // pred_fallthru
        _
      %p1667 = scmp.le.s32.totalorder 2, %s19
      // Predicated region
      $region65: #{tpu_custom_call.1} parent=5 // pred_check
        %p1668 = pneg %p1667
      $region66: #{tpu_custom_call.1} parent=5 // pred_check_branch
        %1670 = sbr.rel (%p1668) target = $region68
      $region67: #{tpu_custom_call.1} parent=5 // pred_region
        %s1671 = ssub.s32 %s19, 2
        // Predicated region
        $region69: #{tpu_custom_call.1} parent=67 // pred_check
          %p1672 = pneg %p200
        $region70: #{tpu_custom_call.1} parent=67 // pred_check_branch
          %1674 = sbr.rel (%p1672) target = $region72
        $region71: #{tpu_custom_call.1} parent=67 // pred_region
          %s1675 = smul.u32 4, %s25
          %p1676 = scmp.lt.s32.totalorder %s1675, 7
          %s1677 = scalar_select %p1676, %s1675, 7
          %s1678 = smul.addr %s1677, 8
          %s1679 = scalar_lea.vmem %s7, %s1678
        $region72: #{tpu_custom_call.1} parent=67 // pred_fallthru
          _
      $region68: #{tpu_custom_call.1} parent=5 // pred_fallthru
        _
    $region6: #{tpu_custom_call.1} parent=1 // loop_footer
      %s23 = sadd.s32 1, %s19
    $region7: #{tpu_custom_call.1} parent=1 // loop_footer_branch
      %18 = sbr.rel target = $region3
    $region8: #{tpu_custom_call.1} parent=1 // loop_exit
      _
    %1680 = vsyncpa [#allocation4], 1
    %s1681 = scalar_lea.sflag [#allocation4], 1
    %1682 = vsyncpa %s1681, 1
    %1683 = vsyncpa [#allocation6], 1

// kernel: tpu_custom_call.1
$region0: #{tpu_custom_call.1}
  #allocation0 [shape = 'u32[]', space=smem, size = 0x4, offset = 0x4, fixed_abs, tag = 'smem constant byte address 0x4 - core index']
  #allocation1 [shape = 'u32[72,128]{1,0:T(1,128)}', space=vmem, size = 0x9000, scoped, tag = 'internal scratch']
  #allocation2 [shape = 'f32[1,1]{1,0:T(1,128)S(1)}', space=vmem, size = 0x200, scoped, tag = 'scoped memory for tpu_custom_call.1']
  %s0 = inlined_call_operand.hbm [shape: bf16[64,784], index: 0, kind: input, shape index: {}]
  %s1 = inlined_call_operand.hbm [shape: bf16[784,256], index: 1, kind: input, shape index: {}]
  %s2 = inlined_call_operand.vmem [shape: f32[1,256], index: 2, kind: input, shape index: {}]
  %s3 = inlined_call_operand.hbm [shape: bf16[256,256], index: 3, kind: input, shape index: {}]
  %s4 = inlined_call_operand.vmem [shape: f32[1,256], index: 4, kind: input, shape index: {}]
  %s5 = inlined_call_operand.vmem [shape: f32[1,256], index: 5, kind: input, shape index: {}]
  %s6 = inlined_call_operand.<no memory space> [shape: f32[1,1], index: 6, kind: input, shape index: {}]
  %s7 = inlined_call_operand.vmem [shape: f32[64,1], index: 7, kind: output, shape index: {}]
  %s8 = sld [smem:[#allocation0]]
  $region73: #{tpu_custom_call.1} parent=0
    _
  %s10 = ssub.s32 1, %s8
  %s11 = scalar_select 0, %s10, %s8
  %v12 = vstv %s6
  %13 = vst [vmem:[#allocation2] sm:$0x1] %v12
  $region1: #{tpu_custom_call.1} parent=0
    #allocation3 [shape = 'u8[114688]{0}', space=vmem, size = 0x1c000, scoped, tag = 'input window, operand 0']
    #allocation4 [shape = 's32[2]{0}', space=sflag, size = 0x8, scoped, tag = 'scoped memory for tpu_custom_call.1']
    #allocation5 [shape = 'u8[401408]{0}', space=vmem, size = 0x62000, scoped, tag = 'input window, operand 1, single buffered']
    #allocation6 [shape = 's32[1]{0}', space=sflag, size = 0x4, scoped, tag = 'scoped memory for tpu_custom_call.1']
    #allocation7 [shape = 'u8[131072]{0}', space=vmem, size = 0x20000, scoped, tag = 'input window, operand 3, single buffered']
    %14 = vsyncpa [#allocation4], 0
    %s15 = scalar_lea.sflag [#allocation4], 1
    %16 = vsyncpa %s15, 0
    %17 = vsyncpa [#allocation6], 0
    loop: start=0, step=1, limit=4
    $region2: #{tpu_custom_call.1} parent=1 // loop_pre_header
      _
    $region3: #{tpu_custom_call.1} parent=1 // loop_header
      %s19 = sphi 0, %s23
      %p20 = scmp.ge.s32.totalorder %s19, 4
      %s29 = sphi 0, %s31
      %s32 = sphi 0, %s29
      %s33 = sphi 0, %s32
      %s49 = sphi 0, %s33
      %s53 = sphi 0, %s53
      %s55 = sphi 0, %s53
      %s56 = sphi 0, %s55
      %s70 = sphi 0, %s56
      %s74 = sphi 0, %s74
      %s76 = sphi 0, %s74
      %s77 = sphi 0, %s76
      %s91 = sphi 0, %s77
      %s95 = sphi 0, %s95
      %s97 = sphi 0, %s95
      %s98 = sphi 0, %s97
      %s112 = sphi 0, %s98
      %s116 = sphi 0, %s116
      %s118 = sphi 0, %s116
      %s119 = sphi 0, %s118
      %s133 = sphi 0, %s119
      %s137 = sphi 0, %s137
      %s139 = sphi 0, %s137
      %s140 = sphi 0, %s139
      %s154 = sphi 0, %s140
      %s158 = sphi 0, %s158
      %s160 = sphi 0, %s158
      %s161 = sphi 0, %s160
      %s175 = sphi 0, %s161
      %s181 = sphi 0, %s183
      %s184 = sphi 0, %s181
      %s185 = sphi 0, %s184
      %s201 = sphi 0, %s185
    $region4: #{tpu_custom_call.1} parent=1 // loop_header_branch
      %22 = sbr.rel (%p20) target = $region8
    $region5: #{tpu_custom_call.1} parent=1 // loop_body
      %s24 = ssub.s32 %s19, 1
      %s25 = ssub.s32 %s19, 2
      %s26 = sadd.s32 %s19, 1
      %s27 = ssub.s32 %s19, %s26
      %p28 = scmp.eq.s32.totalorder %s27, 0
      %s30 = sadd.s32 %s29, 1
      %s31 = scalar_select %p28, %s29, %s30
      %p34 = pneg %p28
      %p35 = scmp.eq.s32.totalorder %s19, 1
      %p36 = por %p34, %p35
      %p37 = scmp.ne.s32.totalorder %s29, %s32
      %p38 = scmp.eq.s32.totalorder %s19, 0
      %p39 = por %p37, %p38
      %p40 = scmp.ne.s32.totalorder %s29, %s32
      %p41 = scmp.eq.s32.totalorder %s24, 1
      %p42 = por %p40, %p41
      %p43 = scmp.ne.s32.totalorder %s32, %s33
      %p44 = scmp.eq.s32.totalorder %s24, 0
      %p45 = por %p43, %p44
      %p46 = scmp.ne.s32.totalorder %s32, %s33
      %p47 = scmp.eq.s32.totalorder %s25, 1
      %p48 = por %p46, %p47
      %p50 = scmp.ne.s32.totalorder %s33, %s49
      %p51 = scmp.eq.s32.totalorder %s25, 0
      %p52 = por %p50, %p51
      %s54 = sadd.s32 %s53, 1
      %p57 = scmp.eq.s32.totalorder %s19, 1
      %p58 = scmp.ne.s32.totalorder %s53, %s55
      %p59 = scmp.eq.s32.totalorder %s19, 0
      %p60 = por %p58, %p59
      %p61 = scmp.ne.s32.totalorder %s53, %s55
      %p62 = scmp.eq.s32.totalorder %s24, 1
      %p63 = por %p61, %p62
      %p64 = scmp.ne.s32.totalorder %s55, %s56
      %p65 = scmp.eq.s32.totalorder %s24, 0
      %p66 = por %p64, %p65
      %p67 = scmp.ne.s32.totalorder %s55, %s56
      %p68 = scmp.eq.s32.totalorder %s25, 1
      %p69 = por %p67, %p68
      %p71 = scmp.ne.s32.totalorder %s56, %s70
      %p72 = scmp.eq.s32.totalorder %s25, 0
      %p73 = por %p71, %p72
      %s75 = sadd.s32 %s74, 1
      %p78 = scmp.eq.s32.totalorder %s19, 1
      %p79 = scmp.ne.s32.totalorder %s74, %s76
      %p80 = scmp.eq.s32.totalorder %s19, 0
      %p81 = por %p79, %p80
      %p82 = scmp.ne.s32.totalorder %s74, %s76
      %p83 = scmp.eq.s32.totalorder %s24, 1
      %p84 = por %p82, %p83
      %p85 = scmp.ne.s32.totalorder %s76, %s77
      %p86 = scmp.eq.s32.totalorder %s24, 0
      %p87 = por %p85, %p86
      %p88 = scmp.ne.s32.totalorder %s76, %s77
      %p89 = scmp.eq.s32.totalorder %s25, 1
      %p90 = por %p88, %p89
      %p92 = scmp.ne.s32.totalorder %s77, %s91
      %p93 = scmp.eq.s32.totalorder %s25, 0
      %p94 = por %p92, %p93
      %s96 = sadd.s32 %s95, 1
      %p99 = scmp.eq.s32.totalorder %s19, 1
      %p100 = scmp.ne.s32.totalorder %s95, %s97
      %p101 = scmp.eq.s32.totalorder %s19, 0
      %p102 = por %p100, %p101
      %p103 = scmp.ne.s32.totalorder %s95, %s97
      %p104 = scmp.eq.s32.totalorder %s24, 1
      %p105 = por %p103, %p104
      %p106 = scmp.ne.s32.totalorder %s97, %s98
      %p107 = scmp.eq.s32.totalorder %s24, 0
      %p108 = por %p106, %p107
      %p109 = scmp.ne.s32.totalorder %s97, %s98
      %p110 = scmp.eq.s32.totalorder %s25, 1
      %p111 = por %p109, %p110
      %p113 = scmp.ne.s32.totalorder %s98, %s112
      %p114 = scmp.eq.s32.totalorder %s25, 0
      %p115 = por %p113, %p114
      %s117 = sadd.s32 %s116, 1
      %p120 = scmp.eq.s32.totalorder %s19, 1
      %p121 = scmp.ne.s32.totalorder %s116, %s118
      %p122 = scmp.eq.s32.totalorder %s19, 0
      %p123 = por %p121, %p122
      %p124 = scmp.ne.s32.totalorder %s116, %s118
      %p125 = scmp.eq.s32.totalorder %s24, 1
      %p126 = por %p124, %p125
      %p127 = scmp.ne.s32.totalorder %s118, %s119
      %p128 = scmp.eq.s32.totalorder %s24, 0
      %p129 = por %p127, %p128
      %p130 = scmp.ne.s32.totalorder %s118, %s119
      %p131 = scmp.eq.s32.totalorder %s25, 1
      %p132 = por %p130, %p131
      %p134 = scmp.ne.s32.totalorder %s119, %s133
      %p135 = scmp.eq.s32.totalorder %s25, 0
      %p136 = por %p134, %p135
      %s138 = sadd.s32 %s137, 1
      %p141 = scmp.eq.s32.totalorder %s19, 1
      %p142 = scmp.ne.s32.totalorder %s137, %s139
      %p143 = scmp.eq.s32.totalorder %s19, 0
      %p144 = por %p142, %p143
      %p145 = scmp.ne.s32.totalorder %s137, %s139
      %p146 = scmp.eq.s32.totalorder %s24, 1
      %p147 = por %p145, %p146
      %p148 = scmp.ne.s32.totalorder %s139, %s140
      %p149 = scmp.eq.s32.totalorder %s24, 0
      %p150 = por %p148, %p149
      %p151 = scmp.ne.s32.totalorder %s139, %s140
      %p152 = scmp.eq.s32.totalorder %s25, 1
      %p153 = por %p151, %p152
      %p155 = scmp.ne.s32.totalorder %s140, %s154
      %p156 = scmp.eq.s32.totalorder %s25, 0
      %p157 = por %p155, %p156
      %s159 = sadd.s32 %s158, 1
      %p162 = scmp.eq.s32.totalorder %s19, 1
      %p163 = scmp.ne.s32.totalorder %s158, %s160
      %p164 = scmp.eq.s32.totalorder %s19, 0
      %p165 = por %p163, %p164
      %p166 = scmp.ne.s32.totalorder %s158, %s160
      %p167 = scmp.eq.s32.totalorder %s24, 1
      %p168 = por %p166, %p167
      %p169 = scmp.ne.s32.totalorder %s160, %s161
      %p170 = scmp.eq.s32.totalorder %s24, 0
      %p171 = por %p169, %p170
      %p172 = scmp.ne.s32.totalorder %s160, %s161
      %p173 = scmp.eq.s32.totalorder %s25, 1
      %p174 = por %p172, %p173
      %p176 = scmp.ne.s32.totalorder %s161, %s175
      %p177 = scmp.eq.s32.totalorder %s25, 0
      %p178 = por %p176, %p177
      %s179 = ssub.s32 %s19, %s26
      %p180 = scmp.eq.s32.totalorder %s179, 0
      %s182 = sadd.s32 %s181, 1
      %s183 = scalar_select %p180, %s181, %s182
      %p186 = pneg %p180
      %p187 = scmp.eq.s32.totalorder %s19, 1
      %p188 = por %p186, %p187
      %p189 = scmp.ne.s32.totalorder %s181, %s184
      %p190 = scmp.eq.s32.totalorder %s19, 0
      %p191 = por %p189, %p190
      %p192 = scmp.ne.s32.totalorder %s181, %s184
      %p193 = scmp.eq.s32.totalorder %s24, 1
      %p194 = por %p192, %p193
      %p195 = scmp.ne.s32.totalorder %s184, %s185
      %p196 = scmp.eq.s32.totalorder %s24, 0
      %p197 = por %p195, %p196
      %p198 = scmp.ne.s32.totalorder %s184, %s185
      %p199 = scmp.eq.s32.totalorder %s25, 1
      %p200 = por %p198, %p199
      %p202 = scmp.ne.s32.totalorder %s185, %s201
      %p203 = scmp.eq.s32.totalorder %s25, 0
      %p204 = por %p202, %p203
      %p205 = scmp.le.s32.totalorder 1, %s19
      %p206 = scmp.lt.s32.totalorder %s19, 3
      %p207 = pnand %p205, %p206
      %p208 = pneg %p207
      // Predicated region
      $region9: #{tpu_custom_call.1} parent=5 // pred_check
        _
      $region10: #{tpu_custom_call.1} parent=5 // pred_check_branch
        %210 = sbr.rel (%p207) target = $region12
      $region11: #{tpu_custom_call.1} parent=5 // pred_region
        %s211 = ssub.s32 %s19, 1
        // Predicated region
        $region13: #{tpu_custom_call.1} parent=11 // pred_check
          %p212 = pneg %p66
        $region14: #{tpu_custom_call.1} parent=11 // pred_check_branch
          %214 = sbr.rel (%p212) target = $region16
        $region15: #{tpu_custom_call.1} parent=11 // pred_region
          %216 = vsyncadd [#allocation6], 0
          %s217 = sshll.u32 %s1, 4
          %s218 = int_to_ptr.hbm [resolvable:$true] %s217
          %s219 = sshll.u32 [#allocation5], 4
          %s220 = int_to_ptr.vmem [resolvable:$true] %s219
          %225 = dma.hbm_to_vmem [thread:$0]  %s218, 12544, %s220, [#allocation6], 128, 128, 8
        $region16: #{tpu_custom_call.1} parent=11 // pred_fallthru
          _
        // Predicated region
        $region17: #{tpu_custom_call.1} parent=11 // pred_check
          %p226 = pneg %p87
        $region18: #{tpu_custom_call.1} parent=11 // pred_check_branch
          %228 = sbr.rel (%p226) target = $region20
        $region19: #{tpu_custom_call.1} parent=11 // pred_region
          _
        $region20: #{tpu_custom_call.1} parent=11 // pred_fallthru
          _
        // Predicated region
        $region21: #{tpu_custom_call.1} parent=11 // pred_check
          %p229 = pneg %p108
        $region22: #{tpu_custom_call.1} parent=11 // pred_check_branch
          %231 = sbr.rel (%p229) target = $region24
        $region23: #{tpu_custom_call.1} parent=11 // pred_region
          %233 = vsyncadd [#allocation6], 0
          %s234 = sshll.u32 %s3, 4
          %s235 = int_to_ptr.hbm [resolvable:$true] %s234
          %s236 = sshll.u32 [#allocation7], 4
          %s237 = int_to_ptr.vmem [resolvable:$true] %s236
          %242 = dma.hbm_to_vmem [thread:$0]  %s235, 4096, %s237, [#allocation6], 128, 128, 8
        $region24: #{tpu_custom_call.1} parent=11 // pred_fallthru
          _
        // Predicated region
        $region25: #{tpu_custom_call.1} parent=11 // pred_check
          %p243 = pneg %p129
        $region26: #{tpu_custom_call.1} parent=11 // pred_check_branch
          %245 = sbr.rel (%p243) target = $region28
        $region27: #{tpu_custom_call.1} parent=11 // pred_region
          _
        $region28: #{tpu_custom_call.1} parent=11 // pred_fallthru
          _
        // Predicated region
        $region29: #{tpu_custom_call.1} parent=11 // pred_check
          %p246 = pneg %p150
        $region30: #{tpu_custom_call.1} parent=11 // pred_check_branch
          %248 = sbr.rel (%p246) target = $region32
        $region31: #{tpu_custom_call.1} parent=11 // pred_region
          _
        $region32: #{tpu_custom_call.1} parent=11 // pred_fallthru
          _
        // Predicated region
        $region33: #{tpu_custom_call.1} parent=11 // pred_check
          %p249 = pneg %p171
        $region34: #{tpu_custom_call.1} parent=11 // pred_check_branch
          %251 = sbr.rel (%p249) target = $region36
        $region35: #{tpu_custom_call.1} parent=11 // pred_region
          _
        $region36: #{tpu_custom_call.1} parent=11 // pred_fallthru
          _
      $region12: #{tpu_custom_call.1} parent=5 // pred_fallthru
        _
      %p252 = scmp.lt.s32.totalorder %s19, 2
      // Predicated region
      $region37: #{tpu_custom_call.1} parent=5 // pred_check
        %p253 = pneg %p252
      $region38: #{tpu_custom_call.1} parent=5 // pred_check_branch
        %255 = sbr.rel (%p253) target = $region40
      $region39: #{tpu_custom_call.1} parent=5 // pred_region
        // Predicated region
        $region41: #{tpu_custom_call.1} parent=39 // pred_check
          %p256 = pneg %p39
        $region42: #{tpu_custom_call.1} parent=39 // pred_check_branch
          %258 = sbr.rel (%p256) target = $region44
        $region43: #{tpu_custom_call.1} parent=39 // pred_region
          %s259 = sand.u32 %s29, 1
          %s260 = scalar_lea.sflag [#allocation4], %s259
          %s261 = sand.u32 %s29, 1
          %s262 = smul.addr %s261, 112
          %s263 = scalar_lea.vmem [#allocation3], %s262
          %s264 = smul.u32 4, %s19
          %266 = vsyncadd %s260, 0
          %s267 = smul.addr %s264, 7
          %s268 = smul.addr %s267, 4
          %s269 = scalar_lea.hbm %s0, %s268
          %s270 = sshll.u32 %s269, 4
          %s271 = int_to_ptr.hbm [resolvable:$true] %s270
          %s272 = sshll.u32 %s263, 4
          %s273 = int_to_ptr.vmem [resolvable:$true] %s272
          %278 = dma.hbm_to_vmem [thread:$0]  %s271, 1792, %s273, %s260, 448, 448, 28
        $region44: #{tpu_custom_call.1} parent=39 // pred_fallthru
          _
      $region40: #{tpu_custom_call.1} parent=5 // pred_fallthru
        _
      %p279 = scmp.le.s32.totalorder 1, %s19
      %p280 = scmp.lt.s32.totalorder %s19, 3
      %p281 = pnand %p279, %p280
      %p282 = pneg %p281
      // Predicated region
      $region45: #{tpu_custom_call.1} parent=5 // pred_check
        _
      $region46: #{tpu_custom_call.1} parent=5 // pred_check_branch
        %284 = sbr.rel (%p281) target = $region48
      $region47: #{tpu_custom_call.1} parent=5 // pred_region
        %s285 = ssub.s32 %s19, 1
        %s286 = sand.u32 %s32, 1
        %s287 = scalar_lea.sflag [#allocation4], %s286
        %s288 = sand.u32 %s32, 1
        %s289 = smul.addr %s288, 112
        %s290 = scalar_lea.vmem [#allocation3], %s289
        // Predicated region
        $region49: #{tpu_custom_call.1} parent=47 // pred_check
          %p291 = pneg %p45
        $region50: #{tpu_custom_call.1} parent=47 // pred_check_branch
          %293 = sbr.rel (%p291) target = $region52
        $region51: #{tpu_custom_call.1} parent=47 // pred_region
          %295 = dma.done %s287, 1792
        $region52: #{tpu_custom_call.1} parent=47 // pred_fallthru
          _
        // Predicated region
        $region53: #{tpu_custom_call.1} parent=47 // pred_check
          %p296 = pneg %p66
        $region54: #{tpu_custom_call.1} parent=47 // pred_check_branch
          %298 = sbr.rel (%p296) target = $region56
        $region55: #{tpu_custom_call.1} parent=47 // pred_region
          %300 = dma.done [#allocation6], 12544
        $region56: #{tpu_custom_call.1} parent=47 // pred_fallthru
          _
        // Predicated region
        $region57: #{tpu_custom_call.1} parent=47 // pred_check
          %p301 = pneg %p108
        $region58: #{tpu_custom_call.1} parent=47 // pred_check_branch
          %303 = sbr.rel (%p301) target = $region60
        $region59: #{tpu_custom_call.1} parent=47 // pred_region
          %305 = dma.done [#allocation6], 4096
        $region60: #{tpu_custom_call.1} parent=47 // pred_fallthru
          _
        %s306 = sand.u32 %s32, 1
        %s307 = scalar_lea.sflag [#allocation4], %s306
        %s308 = sand.u32 %s32, 1
        %s309 = smul.addr %s308, 112
        %s310 = scalar_lea.vmem [#allocation3], %s309
        %p311 = pneg %p45
        %p312 = pneg %p42
        %p313 = pneg %p66
        %p314 = pneg %p63
        %p315 = pneg %p87
        %p316 = pneg %p84
        %p317 = pneg %p108
        %p318 = pneg %p105
        %p319 = pneg %p129
        %p320 = pneg %p126
        %p321 = pneg %p150
        %p322 = pneg %p147
        %p323 = pneg %p171
        %p324 = pneg %p168
        %p325 = pneg %p197
        %p326 = pneg %p194
        %s327 = smul.u32 4, %s24
        %p328 = scmp.lt.s32.totalorder %s327, 7
        %s329 = scalar_select %p328, %s327, 7
        %s330 = smul.addr %s329, 8
        %s331 = scalar_lea.vmem %s7, %s330
        %s332 = smul.u32 4, %s24
        %s333 = smul.u32 4, %s24
        %p334 = scmp.lt.s32.totalorder %s333, 7
        %s335 = scalar_select %p334, %s333, 7
        %s336 = smul.addr %s335, 8
        %s337 = scalar_lea.vmem %s7, %s336
        %s338 = smul.u32 4, %s24
        %v340 = vld [vmem:[%s290] sm:$0xff]
        %v341 = vld [vmem:[%s290 + $0x8] sm:$0xff]
        %v342 = vld [vmem:[%s290 + $0x10] sm:$0xff]
        %v343 = vld [vmem:[%s290 + $0x18] sm:$0xf]
        %v344 = vld [vmem:[%s290 + $0x1c] sm:$0xff]
        %v345 = vld [vmem:[%s290 + $0x24] sm:$0xff]
        %v346 = vld [vmem:[%s290 + $0x2c] sm:$0xff]
        %v347 = vld [vmem:[%s290 + $0x34] sm:$0xf]
        %v348 = vld [vmem:[%s290 + $0x38] sm:$0xff]
        %v349 = vld [vmem:[%s290 + $0x40] sm:$0xff]
        %v350 = vld [vmem:[%s290 + $0x48] sm:$0xff]
        %v351 = vld [vmem:[%s290 + $0x50] sm:$0xf]
        %v352 = vld [vmem:[%s290 + $0x54] sm:$0xff]
        %v353 = vld [vmem:[%s290 + $0x5c] sm:$0xff]
        %v354 = vld [vmem:[%s290 + $0x64] sm:$0xff]
        %v355 = vld [vmem:[%s290 + $0x6c] sm:$0xf]
        %v356 = vld [vmem:[#allocation5] sm:$0xff]
        %v357 = vld [vmem:[#allocation5 + $0x8] sm:$0xff]
        %v358 = vld [vmem:[#allocation5 + $0x10] sm:$0xff]
        %v359 = vld [vmem:[#allocation5 + $0x18] sm:$0xff]
        %v360 = vld [vmem:[#allocation5 + $0x20] sm:$0xff]
        %v361 = vld [vmem:[#allocation5 + $0x28] sm:$0xff]
        %v362 = vld [vmem:[#allocation5 + $0x30] sm:$0xff]
        %v363 = vld [vmem:[#allocation5 + $0x38] sm:$0xff]
        %v364 = vld [vmem:[#allocation5 + $0x40] sm:$0xff]
        %v365 = vld [vmem:[#allocation5 + $0x48] sm:$0xff]
        %v366 = vld [vmem:[#allocation5 + $0x50] sm:$0xff]
        %v367 = vld [vmem:[#allocation5 + $0x58] sm:$0xff]
        %v368 = vld [vmem:[#allocation5 + $0x60] sm:$0xff]
        %v369 = vld [vmem:[#allocation5 + $0x68] sm:$0xff]
        %v370 = vld [vmem:[#allocation5 + $0x70] sm:$0xff]
        %v371 = vld [vmem:[#allocation5 + $0x78] sm:$0xff]
        %v372 = vld [vmem:[#allocation5 + $0x80] sm:$0xff]
        %v373 = vld [vmem:[#allocation5 + $0x88] sm:$0xff]
        %v374 = vld [vmem:[#allocation5 + $0x90] sm:$0xff]
        %v375 = vld [vmem:[#allocation5 + $0x98] sm:$0xff]
        %v376 = vld [vmem:[#allocation5 + $0xa0] sm:$0xff]
        %v377 = vld [vmem:[#allocation5 + $0xa8] sm:$0xff]
        %v378 = vld [vmem:[#allocation5 + $0xb0] sm:$0xff]
        %v379 = vld [vmem:[#allocation5 + $0xb8] sm:$0xff]
        %v380 = vld [vmem:[#allocation5 + $0xc0] sm:$0xff]
        %v381 = vld [vmem:[#allocation5 + $0xc8] sm:$0xff]
        %v382 = vld [vmem:[#allocation5 + $0xd0] sm:$0xff]
        %v383 = vld [vmem:[#allocation5 + $0xd8] sm:$0xff]
        %v384 = vld [vmem:[#allocation5 + $0xe0] sm:$0xff]
        %v385 = vld [vmem:[#allocation5 + $0xe8] sm:$0xff]
        %v386 = vld [vmem:[#allocation5 + $0xf0] sm:$0xff]
        %v387 = vld [vmem:[#allocation5 + $0xf8] sm:$0xff]
        %v388 = vld [vmem:[#allocation5 + $0x100] sm:$0xff]
        %v389 = vld [vmem:[#allocation5 + $0x108] sm:$0xff]
        %v390 = vld [vmem:[#allocation5 + $0x110] sm:$0xff]
        %v391 = vld [vmem:[#allocation5 + $0x118] sm:$0xff]
        %v392 = vld [vmem:[#allocation5 + $0x120] sm:$0xff]
        %v393 = vld [vmem:[#allocation5 + $0x128] sm:$0xff]
        %v394 = vld [vmem:[#allocation5 + $0x130] sm:$0xff]
        %v395 = vld [vmem:[#allocation5 + $0x138] sm:$0xff]
        %v396 = vld [vmem:[#allocation5 + $0x140] sm:$0xff]
        %v397 = vld [vmem:[#allocation5 + $0x148] sm:$0xff]
        %v398 = vld [vmem:[#allocation5 + $0x150] sm:$0xff]
        %v399 = vld [vmem:[#allocation5 + $0x158] sm:$0xff]
        %v400 = vld [vmem:[#allocation5 + $0x160] sm:$0xff]
        %v401 = vld [vmem:[#allocation5 + $0x168] sm:$0xff]
        %v402 = vld [vmem:[#allocation5 + $0x170] sm:$0xff]
        %v403 = vld [vmem:[#allocation5 + $0x178] sm:$0xff]
        %v404 = vld [vmem:[#allocation5 + $0x180] sm:$0xff]
        %v405 = vld [vmem:[#allocation5 + $0x188] sm:$0xff]
        %v406 = vld [vmem:[#allocation5 + $0x190] sm:$0xff]
        %v407 = vld [vmem:[#allocation5 + $0x198] sm:$0xff]
        %v408 = vld [vmem:[#allocation5 + $0x1a0] sm:$0xff]
        %v409 = vld [vmem:[#allocation5 + $0x1a8] sm:$0xff]
        %v410 = vld [vmem:[#allocation5 + $0x1b0] sm:$0xff]
        %v411 = vld [vmem:[#allocation5 + $0x1b8] sm:$0xff]
        %v412 = vld [vmem:[#allocation5 + $0x1c0] sm:$0xff]
        %v413 = vld [vmem:[#allocation5 + $0x1c8] sm:$0xff]
        %v414 = vld [vmem:[#allocation5 + $0x1d0] sm:$0xff]
        %v415 = vld [vmem:[#allocation5 + $0x1d8] sm:$0xff]
        %v416 = vld [vmem:[#allocation5 + $0x1e0] sm:$0xff]
        %v417 = vld [vmem:[#allocation5 + $0x1e8] sm:$0xff]
        %v418 = vld [vmem:[#allocation5 + $0x1f0] sm:$0xff]
        %v419 = vld [vmem:[#allocation5 + $0x1f8] sm:$0xff]
        %v420 = vld [vmem:[#allocation5 + $0x200] sm:$0xff]
        %v421 = vld [vmem:[#allocation5 + $0x208] sm:$0xff]
        %v422 = vld [vmem:[#allocation5 + $0x210] sm:$0xff]
        %v423 = vld [vmem:[#allocation5 + $0x218] sm:$0xff]
        %v424 = vld [vmem:[#allocation5 + $0x220] sm:$0xff]
        %v425 = vld [vmem:[#allocation5 + $0x228] sm:$0xff]
        %v426 = vld [vmem:[#allocation5 + $0x230] sm:$0xff]
        %v427 = vld [vmem:[#allocation5 + $0x238] sm:$0xff]
        %v428 = vld [vmem:[#allocation5 + $0x240] sm:$0xff]
        %v429 = vld [vmem:[#allocation5 + $0x248] sm:$0xff]
        %v430 = vld [vmem:[#allocation5 + $0x250] sm:$0xff]
        %v431 = vld [vmem:[#allocation5 + $0x258] sm:$0xff]
        %v432 = vld [vmem:[#allocation5 + $0x260] sm:$0xff]
        %v433 = vld [vmem:[#allocation5 + $0x268] sm:$0xff]
        %v434 = vld [vmem:[#allocation5 + $0x270] sm:$0xff]
        %v435 = vld [vmem:[#allocation5 + $0x278] sm:$0xff]
        %v436 = vld [vmem:[#allocation5 + $0x280] sm:$0xff]
        %v437 = vld [vmem:[#allocation5 + $0x288] sm:$0xff]
        %v438 = vld [vmem:[#allocation5 + $0x290] sm:$0xff]
        %v439 = vld [vmem:[#allocation5 + $0x298] sm:$0xff]
        %v440 = vld [vmem:[#allocation5 + $0x2a0] sm:$0xff]
        %v441 = vld [vmem:[#allocation5 + $0x2a8] sm:$0xff]
        %v442 = vld [vmem:[#allocation5 + $0x2b0] sm:$0xff]
        %v443 = vld [vmem:[#allocation5 + $0x2b8] sm:$0xff]
        %v444 = vld [vmem:[#allocation5 + $0x2c0] sm:$0xff]
        %v445 = vld [vmem:[#allocation5 + $0x2c8] sm:$0xff]
        %v446 = vld [vmem:[#allocation5 + $0x2d0] sm:$0xff]
        %v447 = vld [vmem:[#allocation5 + $0x2d8] sm:$0xff]
        %v448 = vld [vmem:[#allocation5 + $0x2e0] sm:$0xff]
        %v449 = vld [vmem:[#allocation5 + $0x2e8] sm:$0xff]
        %v450 = vld [vmem:[#allocation5 + $0x2f0] sm:$0xff]
        %v451 = vld [vmem:[#allocation5 + $0x2f8] sm:$0xff]
        %v452 = vld [vmem:[#allocation5 + $0x300] sm:$0xff]
        %v453 = vld [vmem:[#allocation5 + $0x308] sm:$0xff]
        %v454 = vld [vmem:[%s2] sm:$0x3]
        %v456 = vperm.slane %v454, 0
        %v457 = vperm.slane %v454, 1
        %v476 = vunpack.c.l.b16 %v340
        %v477 = vunpack.c.h.b16 %v340
        %v478 = vunpack.c.l.b16 %v341
        %v479 = vunpack.c.h.b16 %v341
        %v480 = vunpack.c.l.b16 %v342
        %v481 = vunpack.c.h.b16 %v342
        %v482 = vunpack.c.l.b16 %v343
        %v483 = vunpack.c.l.b16 %v344
        %v484 = vunpack.c.h.b16 %v344
        %v485 = vunpack.c.l.b16 %v345
        %v486 = vunpack.c.h.b16 %v345
        %v487 = vunpack.c.l.b16 %v346
        %v488 = vunpack.c.h.b16 %v346
        %v489 = vunpack.c.l.b16 %v347
        %v490 = vunpack.c.l.b16 %v348
        %v491 = vunpack.c.h.b16 %v348
        %v492 = vunpack.c.l.b16 %v349
        %v493 = vunpack.c.h.b16 %v349
        %v494 = vunpack.c.l.b16 %v350
        %v495 = vunpack.c.h.b16 %v350
        %v496 = vunpack.c.l.b16 %v351
        %v497 = vunpack.c.l.b16 %v352
        %v498 = vunpack.c.h.b16 %v352
        %v499 = vunpack.c.l.b16 %v353
        %v500 = vunpack.c.h.b16 %v353
        %v501 = vunpack.c.l.b16 %v354
        %v502 = vunpack.c.h.b16 %v354
        %v503 = vunpack.c.l.b16 %v355
        %v504 = vpack.c.b16 %v483, %v476
        %v505 = vpack.c.b16 %v484, %v477
        %v506 = vpack.c.b16 %v485, %v478
        %v507 = vpack.c.b16 %v486, %v479
        %v508 = vpack.c.b16 %v487, %v480
        %v509 = vpack.c.b16 %v488, %v481
        %v510 = vpack.c.b16 %v489, %v482
        %v511 = vpack.c.b16 %v497, %v490
        %v512 = vpack.c.b16 %v498, %v491
        %v513 = vpack.c.b16 %v499, %v492
        %v514 = vpack.c.b16 %v500, %v493
        %v515 = vpack.c.b16 %v501, %v494
        %v516 = vpack.c.b16 %v502, %v495
        %v517 = vpack.c.b16 %v503, %v496
        %v628 = vunpack.c.l.b16 %v356
        %v629 = vunpack.c.h.b16 %v356
        %v630 = vunpack.c.l.b16 %v357
        %v631 = vunpack.c.h.b16 %v357
        %v632 = vunpack.c.l.b16 %v358
        %v633 = vunpack.c.h.b16 %v358
        %v634 = vunpack.c.l.b16 %v359
        %v635 = vunpack.c.h.b16 %v359
        %v636 = vunpack.c.l.b16 %v360
        %v637 = vunpack.c.h.b16 %v360
        %v638 = vunpack.c.l.b16 %v361
        %v639 = vunpack.c.h.b16 %v361
        %v640 = vunpack.c.l.b16 %v362
        %v641 = vunpack.c.h.b16 %v362
        %v642 = vunpack.c.l.b16 %v363
        %v643 = vunpack.c.h.b16 %v363
        %v644 = vunpack.c.l.b16 %v364
        %v645 = vunpack.c.h.b16 %v364
        %v646 = vunpack.c.l.b16 %v365
        %v647 = vunpack.c.h.b16 %v365
        %v648 = vunpack.c.l.b16 %v366
        %v649 = vunpack.c.h.b16 %v366
        %v650 = vunpack.c.l.b16 %v367
        %v651 = vunpack.c.h.b16 %v367
        %v652 = vunpack.c.l.b16 %v368
        %v653 = vunpack.c.h.b16 %v368
        %v654 = vunpack.c.l.b16 %v369
        %v655 = vunpack.c.h.b16 %v369
        %v656 = vunpack.c.l.b16 %v370
        %v657 = vunpack.c.h.b16 %v370
        %v658 = vunpack.c.l.b16 %v371
        %v659 = vunpack.c.h.b16 %v371
        %v660 = vunpack.c.l.b16 %v372
        %v661 = vunpack.c.h.b16 %v372
        %v662 = vunpack.c.l.b16 %v373
        %v663 = vunpack.c.h.b16 %v373
        %v664 = vunpack.c.l.b16 %v374
        %v665 = vunpack.c.h.b16 %v374
        %v666 = vunpack.c.l.b16 %v375
        %v667 = vunpack.c.h.b16 %v375
        %v668 = vunpack.c.l.b16 %v376
        %v669 = vunpack.c.h.b16 %v376
        %v670 = vunpack.c.l.b16 %v377
        %v671 = vunpack.c.h.b16 %v377
        %v672 = vunpack.c.l.b16 %v378
        %v673 = vunpack.c.h.b16 %v378
        %v674 = vunpack.c.l.b16 %v379
        %v675 = vunpack.c.h.b16 %v379
        %v676 = vunpack.c.l.b16 %v380
        %v677 = vunpack.c.h.b16 %v380
        %v678 = vunpack.c.l.b16 %v381
        %v679 = vunpack.c.h.b16 %v381
        %v680 = vunpack.c.l.b16 %v382
        %v681 = vunpack.c.h.b16 %v382
        %v682 = vunpack.c.l.b16 %v383
        %v683 = vunpack.c.h.b16 %v383
        %v684 = vunpack.c.l.b16 %v384
        %v685 = vunpack.c.h.b16 %v384
        %v686 = vunpack.c.l.b16 %v385
        %v687 = vunpack.c.h.b16 %v385
        %v688 = vunpack.c.l.b16 %v386
        %v689 = vunpack.c.h.b16 %v386
        %v690 = vunpack.c.l.b16 %v387
        %v691 = vunpack.c.h.b16 %v387
        %v692 = vunpack.c.l.b16 %v388
        %v693 = vunpack.c.h.b16 %v388
        %v694 = vunpack.c.l.b16 %v389
        %v695 = vunpack.c.h.b16 %v389
        %v696 = vunpack.c.l.b16 %v390
        %v697 = vunpack.c.h.b16 %v390
        %v698 = vunpack.c.l.b16 %v391
        %v699 = vunpack.c.h.b16 %v391
        %v700 = vunpack.c.l.b16 %v392
        %v701 = vunpack.c.h.b16 %v392
        %v702 = vunpack.c.l.b16 %v393
        %v703 = vunpack.c.h.b16 %v393
        %v704 = vunpack.c.l.b16 %v394
        %v705 = vunpack.c.h.b16 %v394
        %v706 = vunpack.c.l.b16 %v395
        %v707 = vunpack.c.h.b16 %v395
        %v708 = vunpack.c.l.b16 %v396
        %v709 = vunpack.c.h.b16 %v396
        %v710 = vunpack.c.l.b16 %v397
        %v711 = vunpack.c.h.b16 %v397
        %v712 = vunpack.c.l.b16 %v398
        %v713 = vunpack.c.h.b16 %v398
        %v714 = vunpack.c.l.b16 %v399
        %v715 = vunpack.c.h.b16 %v399
        %v716 = vunpack.c.l.b16 %v400
        %v717 = vunpack.c.h.b16 %v400
        %v718 = vunpack.c.l.b16 %v401
        %v719 = vunpack.c.h.b16 %v401
        %v720 = vunpack.c.l.b16 %v402
        %v721 = vunpack.c.h.b16 %v402
        %v722 = vunpack.c.l.b16 %v403
        %v723 = vunpack.c.h.b16 %v403
        %v724 = vunpack.c.l.b16 %v404
        %v725 = vunpack.c.h.b16 %v404
        %v726 = vunpack.c.l.b16 %v405
        %v727 = vunpack.c.h.b16 %v405
        %v728 = vunpack.c.l.b16 %v406
        %v729 = vunpack.c.h.b16 %v406
        %v730 = vunpack.c.l.b16 %v407
        %v731 = vunpack.c.h.b16 %v407
        %v732 = vunpack.c.l.b16 %v408
        %v733 = vunpack.c.h.b16 %v408
        %v734 = vunpack.c.l.b16 %v409
        %v735 = vunpack.c.h.b16 %v409
        %v736 = vunpack.c.l.b16 %v410
        %v737 = vunpack.c.h.b16 %v410
        %v738 = vunpack.c.l.b16 %v411
        %v739 = vunpack.c.h.b16 %v411
        %v740 = vunpack.c.l.b16 %v412
        %v741 = vunpack.c.h.b16 %v412
        %v742 = vunpack.c.l.b16 %v413
        %v743 = vunpack.c.h.b16 %v413
        %v744 = vunpack.c.l.b16 %v414
        %v745 = vunpack.c.h.b16 %v414
        %v746 = vunpack.c.l.b16 %v415
        %v747 = vunpack.c.h.b16 %v415
        %v748 = vunpack.c.l.b16 %v416
        %v749 = vunpack.c.h.b16 %v416
        %v750 = vunpack.c.l.b16 %v417
        %v751 = vunpack.c.h.b16 %v417
        %v752 = vunpack.c.l.b16 %v418
        %v753 = vunpack.c.h.b16 %v418
        %v754 = vunpack.c.l.b16 %v419
        %v755 = vunpack.c.h.b16 %v419
        %v756 = vunpack.c.l.b16 %v420
        %v757 = vunpack.c.h.b16 %v420
        %v758 = vunpack.c.l.b16 %v421
        %v759 = vunpack.c.h.b16 %v421
        %v760 = vunpack.c.l.b16 %v422
        %v761 = vunpack.c.h.b16 %v422
        %v762 = vunpack.c.l.b16 %v423
        %v763 = vunpack.c.h.b16 %v423
        %v764 = vunpack.c.l.b16 %v424
        %v765 = vunpack.c.h.b16 %v424
        %v766 = vunpack.c.l.b16 %v425
        %v767 = vunpack.c.h.b16 %v425
        %v768 = vunpack.c.l.b16 %v426
        %v769 = vunpack.c.h.b16 %v426
        %v770 = vunpack.c.l.b16 %v427
        %v771 = vunpack.c.h.b16 %v427
        %v772 = vunpack.c.l.b16 %v428
        %v773 = vunpack.c.h.b16 %v428
        %v774 = vunpack.c.l.b16 %v429
        %v775 = vunpack.c.h.b16 %v429
        %v776 = vunpack.c.l.b16 %v430
        %v777 = vunpack.c.h.b16 %v430
        %v778 = vunpack.c.l.b16 %v431
        %v779 = vunpack.c.h.b16 %v431
        %v780 = vunpack.c.l.b16 %v432
        %v781 = vunpack.c.h.b16 %v432
        %v782 = vunpack.c.l.b16 %v433
        %v783 = vunpack.c.h.b16 %v433
        %v784 = vunpack.c.l.b16 %v434
        %v785 = vunpack.c.h.b16 %v434
        %v786 = vunpack.c.l.b16 %v435
        %v787 = vunpack.c.h.b16 %v435
        %v788 = vunpack.c.l.b16 %v436
        %v789 = vunpack.c.h.b16 %v436
        %v790 = vunpack.c.l.b16 %v437
        %v791 = vunpack.c.h.b16 %v437
        %v792 = vunpack.c.l.b16 %v438
        %v793 = vunpack.c.h.b16 %v438
        %v794 = vunpack.c.l.b16 %v439
        %v795 = vunpack.c.h.b16 %v439
        %v796 = vunpack.c.l.b16 %v440
        %v797 = vunpack.c.h.b16 %v440
        %v798 = vunpack.c.l.b16 %v441
        %v799 = vunpack.c.h.b16 %v441
        %v800 = vunpack.c.l.b16 %v442
        %v801 = vunpack.c.h.b16 %v442
        %v802 = vunpack.c.l.b16 %v443
        %v803 = vunpack.c.h.b16 %v443
        %v804 = vunpack.c.l.b16 %v444
        %v805 = vunpack.c.h.b16 %v444
        %v806 = vunpack.c.l.b16 %v445
        %v807 = vunpack.c.h.b16 %v445
        %v808 = vunpack.c.l.b16 %v446
        %v809 = vunpack.c.h.b16 %v446
        %v810 = vunpack.c.l.b16 %v447
        %v811 = vunpack.c.h.b16 %v447
        %v812 = vunpack.c.l.b16 %v448
        %v813 = vunpack.c.h.b16 %v448
        %v814 = vunpack.c.l.b16 %v449
        %v815 = vunpack.c.h.b16 %v449
        %v816 = vunpack.c.l.b16 %v450
        %v817 = vunpack.c.h.b16 %v450
        %v818 = vunpack.c.l.b16 %v451
        %v819 = vunpack.c.h.b16 %v451
        %v820 = vunpack.c.l.b16 %v452
        %v821 = vunpack.c.h.b16 %v452
        %v822 = vunpack.c.l.b16 %v453
        %v823 = vunpack.c.h.b16 %v453
        %v824 = vpack.c.b16 %v630, %v628
        %v825 = vpack.c.b16 %v631, %v629
        %v826 = vpack.c.b16 %v634, %v632
        %v827 = vpack.c.b16 %v635, %v633
        %v828 = vpack.c.b16 %v638, %v636
        %v829 = vpack.c.b16 %v639, %v637
        %v830 = vpack.c.b16 %v642, %v640
        %v831 = vpack.c.b16 %v643, %v641
        %v832 = vpack.c.b16 %v646, %v644
        %v833 = vpack.c.b16 %v647, %v645
        %v834 = vpack.c.b16 %v650, %v648
        %v835 = vpack.c.b16 %v651, %v649
        %v836 = vpack.c.b16 %v654, %v652
        %v837 = vpack.c.b16 %v655, %v653
        %v838 = vpack.c.b16 %v658, %v656
        %v839 = vpack.c.b16 %v659, %v657
        %v840 = vpack.c.b16 %v662, %v660
        %v841 = vpack.c.b16 %v663, %v661
        %v842 = vpack.c.b16 %v666, %v664
        %v843 = vpack.c.b16 %v667, %v665
        %v844 = vpack.c.b16 %v670, %v668
        %v845 = vpack.c.b16 %v671, %v669
        %v846 = vpack.c.b16 %v674, %v672
        %v847 = vpack.c.b16 %v675, %v673
        %v848 = vpack.c.b16 %v678, %v676
        %v849 = vpack.c.b16 %v679, %v677
        %v850 = vpack.c.b16 %v682, %v680
        %v851 = vpack.c.b16 %v683, %v681
        %v852 = vpack.c.b16 %v686, %v684
        %v853 = vpack.c.b16 %v687, %v685
        %v854 = vpack.c.b16 %v690, %v688
        %v855 = vpack.c.b16 %v691, %v689
        %v856 = vpack.c.b16 %v694, %v692
        %v857 = vpack.c.b16 %v695, %v693
        %v858 = vpack.c.b16 %v698, %v696
        %v859 = vpack.c.b16 %v699, %v697
        %v860 = vpack.c.b16 %v702, %v700
        %v861 = vpack.c.b16 %v703, %v701
        %v862 = vpack.c.b16 %v706, %v704
        %v863 = vpack.c.b16 %v707, %v705
        %v864 = vpack.c.b16 %v710, %v708
        %v865 = vpack.c.b16 %v711, %v709
        %v866 = vpack.c.b16 %v714, %v712
        %v867 = vpack.c.b16 %v715, %v713
        %v868 = vpack.c.b16 %v718, %v716
        %v869 = vpack.c.b16 %v719, %v717
        %v870 = vpack.c.b16 %v722, %v720
        %v871 = vpack.c.b16 %v723, %v721
        %v872 = vpack.c.b16 %v726, %v724
        %v873 = vpack.c.b16 %v727, %v725
        %v874 = vpack.c.b16 %v730, %v728
        %v875 = vpack.c.b16 %v731, %v729
        %v876 = vpack.c.b16 %v734, %v732
        %v877 = vpack.c.b16 %v735, %v733
        %v878 = vpack.c.b16 %v738, %v736
        %v879 = vpack.c.b16 %v739, %v737
        %v880 = vpack.c.b16 %v742, %v740
        %v881 = vpack.c.b16 %v743, %v741
        %v882 = vpack.c.b16 %v746, %v744
        %v883 = vpack.c.b16 %v747, %v745
        %v884 = vpack.c.b16 %v750, %v748
        %v885 = vpack.c.b16 %v751, %v749
        %v886 = vpack.c.b16 %v754, %v752
        %v887 = vpack.c.b16 %v755, %v753
        %v888 = vpack.c.b16 %v758, %v756
        %v889 = vpack.c.b16 %v759, %v757
        %v890 = vpack.c.b16 %v762, %v760
        %v891 = vpack.c.b16 %v763, %v761
        %v892 = vpack.c.b16 %v766, %v764
        %v893 = vpack.c.b16 %v767, %v765
        %v894 = vpack.c.b16 %v770, %v768
        %v895 = vpack.c.b16 %v771, %v769
        %v896 = vpack.c.b16 %v774, %v772
        %v897 = vpack.c.b16 %v775, %v773
        %v898 = vpack.c.b16 %v778, %v776
        %v899 = vpack.c.b16 %v779, %v777
        %v900 = vpack.c.b16 %v782, %v780
        %v901 = vpack.c.b16 %v783, %v781
        %v902 = vpack.c.b16 %v786, %v784
        %v903 = vpack.c.b16 %v787, %v785
        %v904 = vpack.c.b16 %v790, %v788
        %v905 = vpack.c.b16 %v791, %v789
        %v906 = vpack.c.b16 %v794, %v792
        %v907 = vpack.c.b16 %v795, %v793
        %v908 = vpack.c.b16 %v798, %v796
        %v909 = vpack.c.b16 %v799, %v797
        %v910 = vpack.c.b16 %v802, %v800
        %v911 = vpack.c.b16 %v803, %v801
        %v912 = vpack.c.b16 %v806, %v804
        %v913 = vpack.c.b16 %v807, %v805
        %v914 = vpack.c.b16 %v810, %v808
        %v915 = vpack.c.b16 %v811, %v809
        %v916 = vpack.c.b16 %v814, %v812
        %v917 = vpack.c.b16 %v815, %v813
        %v918 = vpack.c.b16 %v818, %v816
        %v919 = vpack.c.b16 %v819, %v817
        %v920 = vpack.c.b16 %v822, %v820
        %v921 = vpack.c.b16 %v823, %v821
        %vm1020 = vcmask 130048
        %v1022 = vsel %vm1020, %v510, 0
        %v1025 = vsel %vm1020, %v517, 0
        %1027 = vmatpush.bf16.msra.mxu0 %v838
        %1028 = vmatpush.bf16.msra.mxu0 %v836
        %1029 = vmatpush.bf16.msra.mxu0 %v834
        %1030 = vmatpush.bf16.msra.mxu0 %v832
        %1031 = vmatpush.bf16.msra.mxu0 %v830
        %1032 = vmatpush.bf16.msra.mxu0 %v828
        %1033 = vmatpush.bf16.msra.mxu0 %v826
        %1034 = vmatpush.bf16.msra.mxu0 %v824
        %1035 = vmatmul.bf16.gmra.mxu0 %v504
        %v1036 = vpop.f32.mrf.mxu0
        %v1037 = vadd.f32 %v456, %v1036
        %v1038 = vpop.f32.mrf.mxu0
        %v1039 = vadd.f32 %v456, %v1038
        %1040 = vmatmul.bf16.gmra.mxu0 %v511
        %v1041 = vpop.f32.mrf.mxu0
        %v1042 = vadd.f32 %v456, %v1041
        %v1043 = vpop.f32.mrf.mxu0
        %v1044 = vadd.f32 %v456, %v1043
        %1045 = vdwg.mxu0
        %1046 = vmatpush.bf16.msra.mxu0 %v854
        %1047 = vmatpush.bf16.msra.mxu0 %v852
        %1048 = vmatpush.bf16.msra.mxu0 %v850
        %1049 = vmatpush.bf16.msra.mxu0 %v848
        %1050 = vmatpush.bf16.msra.mxu0 %v846
        %1051 = vmatpush.bf16.msra.mxu0 %v844
        %1052 = vmatpush.bf16.msra.mxu0 %v842
        %1053 = vmatpush.bf16.msra.mxu0 %v840
        %1054 = vmatmul.bf16.gmra.mxu0 %v505
        %v1055 = vpop.f32.mrf.mxu0
        %v1056 = vadd.f32 %v1037, %v1055
        %v1057 = vpop.f32.mrf.mxu0
        %v1058 = vadd.f32 %v1039, %v1057
        %1059 = vmatmul.bf16.gmra.mxu0 %v512
        %v1060 = vpop.f32.mrf.mxu0
        %v1061 = vadd.f32 %v1042, %v1060
        %v1062 = vpop.f32.mrf.mxu0
        %v1063 = vadd.f32 %v1044, %v1062
        %1064 = vdwg.mxu0
        %1065 = vmatpush.bf16.msra.mxu0 %v870
        %1066 = vmatpush.bf16.msra.mxu0 %v868
        %1067 = vmatpush.bf16.msra.mxu0 %v866
        %1068 = vmatpush.bf16.msra.mxu0 %v864
        %1069 = vmatpush.bf16.msra.mxu0 %v862
        %1070 = vmatpush.bf16.msra.mxu0 %v860
        %1071 = vmatpush.bf16.msra.mxu0 %v858
        %1072 = vmatpush.bf16.msra.mxu0 %v856
        %1073 = vmatmul.bf16.gmra.mxu0 %v506
        %v1074 = vpop.f32.mrf.mxu0
        %v1075 = vadd.f32 %v1056, %v1074
        %v1076 = vpop.f32.mrf.mxu0
        %v1077 = vadd.f32 %v1058, %v1076
        %1078 = vmatmul.bf16.gmra.mxu0 %v513
        %v1079 = vpop.f32.mrf.mxu0
        %v1080 = vadd.f32 %v1061, %v1079
        %v1081 = vpop.f32.mrf.mxu0
        %v1082 = vadd.f32 %v1063, %v1081
        %1083 = vdwg.mxu0
        %1084 = vmatpush.bf16.msra.mxu0 %v886
        %1085 = vmatpush.bf16.msra.mxu0 %v884
        %1086 = vmatpush.bf16.msra.mxu0 %v882
        %1087 = vmatpush.bf16.msra.mxu0 %v880
        %1088 = vmatpush.bf16.msra.mxu0 %v878
        %1089 = vmatpush.bf16.msra.mxu0 %v876
        %1090 = vmatpush.bf16.msra.mxu0 %v874
        %1091 = vmatpush.bf16.msra.mxu0 %v872
        %1092 = vmatmul.bf16.gmra.mxu0 %v507
        %v1093 = vpop.f32.mrf.mxu0
        %v1094 = vadd.f32 %v1075, %v1093
        %v1095 = vpop.f32.mrf.mxu0
        %v1096 = vadd.f32 %v1077, %v1095
        %1097 = vmatmul.bf16.gmra.mxu0 %v514
        %v1098 = vpop.f32.mrf.mxu0
        %v1099 = vadd.f32 %v1080, %v1098
        %v1100 = vpop.f32.mrf.mxu0
        %v1101 = vadd.f32 %v1082, %v1100
        %1102 = vdwg.mxu0
        %1103 = vmatpush.bf16.msra.mxu0 %v902
        %1104 = vmatpush.bf16.msra.mxu0 %v900
        %1105 = vmatpush.bf16.msra.mxu0 %v898
        %1106 = vmatpush.bf16.msra.mxu0 %v896
        %1107 = vmatpush.bf16.msra.mxu0 %v894
        %1108 = vmatpush.bf16.msra.mxu0 %v892
        %1109 = vmatpush.bf16.msra.mxu0 %v890
        %1110 = vmatpush.bf16.msra.mxu0 %v888
        %1111 = vmatmul.bf16.gmra.mxu0 %v508
        %v1112 = vpop.f32.mrf.mxu0
        %v1113 = vadd.f32 %v1094, %v1112
        %v1114 = vpop.f32.mrf.mxu0
        %v1115 = vadd.f32 %v1096, %v1114
        %1116 = vmatmul.bf16.gmra.mxu0 %v515
        %v1117 = vpop.f32.mrf.mxu0
        %v1118 = vadd.f32 %v1099, %v1117
        %v1119 = vpop.f32.mrf.mxu0
        %v1120 = vadd.f32 %v1101, %v1119
        %1121 = vdwg.mxu0
        %1122 = vmatpush.bf16.msra.mxu0 %v918
        %1123 = vmatpush.bf16.msra.mxu0 %v916
        %1124 = vmatpush.bf16.msra.mxu0 %v914
        %1125 = vmatpush.bf16.msra.mxu0 %v912
        %1126 = vmatpush.bf16.msra.mxu0 %v910
        %1127 = vmatpush.bf16.msra.mxu0 %v908
        %1128 = vmatpush.bf16.msra.mxu0 %v906
        %1129 = vmatpush.bf16.msra.mxu0 %v904
        %1130 = vmatmul.bf16.gmra.mxu0 %v509
        %v1131 = vpop.f32.mrf.mxu0
        %v1132 = vadd.f32 %v1113, %v1131
        %v1133 = vpop.f32.mrf.mxu0
        %v1134 = vadd.f32 %v1115, %v1133
        %1135 = vmatmul.bf16.gmra.mxu0 %v516
        %v1136 = vpop.f32.mrf.mxu0
        %v1137 = vadd.f32 %v1118, %v1136
        %v1138 = vpop.f32.mrf.mxu0
        %v1139 = vadd.f32 %v1120, %v1138
        %1140 = vdwg.mxu0
        %1141 = vmatpush.bf16.msra.mxu0 0
        %1142 = vmatpush.bf16.msra.mxu0 0
        %1143 = vmatpush.bf16.msra.mxu0 0
        %1144 = vmatpush.bf16.msra.mxu0 0
        %1145 = vmatpush.bf16.msra.mxu0 0
        %1146 = vmatpush.bf16.msra.mxu0 0
        %1147 = vmatpush.bf16.msra.mxu0 0
        %1148 = vmatpush.bf16.msra.mxu0 %v920
        %1149 = vmatmul.bf16.gmra.mxu0 %v1022
        %v1150 = vpop.f32.mrf.mxu0
        %v1151 = vadd.f32 %v1132, %v1150
        %v1152 = vpop.f32.mrf.mxu0
        %v1153 = vadd.f32 %v1134, %v1152
        %1154 = vmatmul.bf16.gmra.mxu0 %v1025
        %v1155 = vpop.f32.mrf.mxu0
        %v1156 = vadd.f32 %v1137, %v1155
        %v1157 = vpop.f32.mrf.mxu0
        %v1158 = vadd.f32 %v1139, %v1157
        %1159 = vdwg.mxu0
        %1160 = vmatpush.bf16.msra.mxu0 %v839
        %1161 = vmatpush.bf16.msra.mxu0 %v837
        %1162 = vmatpush.bf16.msra.mxu0 %v835
        %1163 = vmatpush.bf16.msra.mxu0 %v833
        %1164 = vmatpush.bf16.msra.mxu0 %v831
        %1165 = vmatpush.bf16.msra.mxu0 %v829
        %1166 = vmatpush.bf16.msra.mxu0 %v827
        %1167 = vmatpush.bf16.msra.mxu0 %v825
        %1168 = vmatmul.bf16.gmra.mxu0 %v504
        %v1169 = vpop.f32.mrf.mxu0
        %v1170 = vadd.f32 %v457, %v1169
        %v1171 = vpop.f32.mrf.mxu0
        %v1172 = vadd.f32 %v457, %v1171
        %1173 = vmatmul.bf16.gmra.mxu0 %v511
        %v1174 = vpop.f32.mrf.mxu0
        %v1175 = vadd.f32 %v457, %v1174
        %v1176 = vpop.f32.mrf.mxu0
        %v1177 = vadd.f32 %v457, %v1176
        %1178 = vdwg.mxu0
        %1179 = vmatpush.bf16.msra.mxu0 %v855
        %1180 = vmatpush.bf16.msra.mxu0 %v853
        %1181 = vmatpush.bf16.msra.mxu0 %v851
        %1182 = vmatpush.bf16.msra.mxu0 %v849
        %1183 = vmatpush.bf16.msra.mxu0 %v847
        %1184 = vmatpush.bf16.msra.mxu0 %v845
        %1185 = vmatpush.bf16.msra.mxu0 %v843
        %1186 = vmatpush.bf16.msra.mxu0 %v841
        %1187 = vmatmul.bf16.gmra.mxu0 %v505
        %v1188 = vpop.f32.mrf.mxu0
        %v1189 = vadd.f32 %v1170, %v1188
        %v1190 = vpop.f32.mrf.mxu0
        %v1191 = vadd.f32 %v1172, %v1190
        %1192 = vmatmul.bf16.gmra.mxu0 %v512
        %v1193 = vpop.f32.mrf.mxu0
        %v1194 = vadd.f32 %v1175, %v1193
        %v1195 = vpop.f32.mrf.mxu0
        %v1196 = vadd.f32 %v1177, %v1195
        %1197 = vdwg.mxu0
        %1198 = vmatpush.bf16.msra.mxu0 %v871
        %1199 = vmatpush.bf16.msra.mxu0 %v869
        %1200 = vmatpush.bf16.msra.mxu0 %v867
        %1201 = vmatpush.bf16.msra.mxu0 %v865
        %1202 = vmatpush.bf16.msra.mxu0 %v863
        %1203 = vmatpush.bf16.msra.mxu0 %v861
        %1204 = vmatpush.bf16.msra.mxu0 %v859
        %1205 = vmatpush.bf16.msra.mxu0 %v857
        %1206 = vmatmul.bf16.gmra.mxu0 %v506
        %v1207 = vpop.f32.mrf.mxu0
        %v1208 = vadd.f32 %v1189, %v1207
        %v1209 = vpop.f32.mrf.mxu0
        %v1210 = vadd.f32 %v1191, %v1209
        %1211 = vmatmul.bf16.gmra.mxu0 %v513
        %v1212 = vpop.f32.mrf.mxu0
        %v1213 = vadd.f32 %v1194, %v1212
        %v1214 = vpop.f32.mrf.mxu0
        %v1215 = vadd.f32 %v1196, %v1214
        %1216 = vdwg.mxu0
        %1217 = vmatpush.bf16.msra.mxu0 %v887
        %1218 = vmatpush.bf16.msra.mxu0 %v885
        %1219 = vmatpush.bf16.msra.mxu0 %v883
        %1220 = vmatpush.bf16.msra.mxu0 %v881
        %1221 = vmatpush.bf16.msra.mxu0 %v879
        %1222 = vmatpush.bf16.msra.mxu0 %v877
        %1223 = vmatpush.bf16.msra.mxu0 %v875
        %1224 = vmatpush.bf16.msra.mxu0 %v873
        %1225 = vmatmul.bf16.gmra.mxu0 %v507
        %v1226 = vpop.f32.mrf.mxu0
        %v1227 = vadd.f32 %v1208, %v1226
        %v1228 = vpop.f32.mrf.mxu0
        %v1229 = vadd.f32 %v1210, %v1228
        %1230 = vmatmul.bf16.gmra.mxu0 %v514
        %v1231 = vpop.f32.mrf.mxu0
        %v1232 = vadd.f32 %v1213, %v1231
        %v1233 = vpop.f32.mrf.mxu0
        %v1234 = vadd.f32 %v1215, %v1233
        %1235 = vdwg.mxu0
        %1236 = vmatpush.bf16.msra.mxu0 %v903
        %1237 = vmatpush.bf16.msra.mxu0 %v901
        %1238 = vmatpush.bf16.msra.mxu0 %v899
        %1239 = vmatpush.bf16.msra.mxu0 %v897
        %1240 = vmatpush.bf16.msra.mxu0 %v895
        %1241 = vmatpush.bf16.msra.mxu0 %v893
        %1242 = vmatpush.bf16.msra.mxu0 %v891
        %1243 = vmatpush.bf16.msra.mxu0 %v889
        %1244 = vmatmul.bf16.gmra.mxu0 %v508
        %v1245 = vpop.f32.mrf.mxu0
        %v1246 = vadd.f32 %v1227, %v1245
        %v1247 = vpop.f32.mrf.mxu0
        %v1248 = vadd.f32 %v1229, %v1247
        %1249 = vmatmul.bf16.gmra.mxu0 %v515
        %v1250 = vpop.f32.mrf.mxu0
        %v1251 = vadd.f32 %v1232, %v1250
        %v1252 = vpop.f32.mrf.mxu0
        %v1253 = vadd.f32 %v1234, %v1252
        %1254 = vdwg.mxu0
        %1255 = vmatpush.bf16.msra.mxu0 %v919
        %1256 = vmatpush.bf16.msra.mxu0 %v917
        %1257 = vmatpush.bf16.msra.mxu0 %v915
        %1258 = vmatpush.bf16.msra.mxu0 %v913
        %1259 = vmatpush.bf16.msra.mxu0 %v911
        %1260 = vmatpush.bf16.msra.mxu0 %v909
        %1261 = vmatpush.bf16.msra.mxu0 %v907
        %1262 = vmatpush.bf16.msra.mxu0 %v905
        %1263 = vmatmul.bf16.gmra.mxu0 %v509
        %v1264 = vpop.f32.mrf.mxu0
        %v1265 = vadd.f32 %v1246, %v1264
        %v1266 = vpop.f32.mrf.mxu0
        %v1267 = vadd.f32 %v1248, %v1266
        %1268 = vmatmul.bf16.gmra.mxu0 %v516
        %v1269 = vpop.f32.mrf.mxu0
        %v1270 = vadd.f32 %v1251, %v1269
        %v1271 = vpop.f32.mrf.mxu0
        %v1272 = vadd.f32 %v1253, %v1271
        %1273 = vdwg.mxu0
        %1274 = vmatpush.bf16.msra.mxu0 0
        %1275 = vmatpush.bf16.msra.mxu0 0
        %1276 = vmatpush.bf16.msra.mxu0 0
        %1277 = vmatpush.bf16.msra.mxu0 0
        %1278 = vmatpush.bf16.msra.mxu0 0
        %1279 = vmatpush.bf16.msra.mxu0 0
        %1280 = vmatpush.bf16.msra.mxu0 0
        %1281 = vmatpush.bf16.msra.mxu0 %v921
        %1282 = vmatmul.bf16.gmra.mxu0 %v1022
        %v1283 = vpop.f32.mrf.mxu0
        %v1284 = vadd.f32 %v1265, %v1283
        %v1285 = vpop.f32.mrf.mxu0
        %v1286 = vadd.f32 %v1267, %v1285
        %1287 = vmatmul.bf16.gmra.mxu0 %v1025
        %v1288 = vpop.f32.mrf.mxu0
        %v1289 = vadd.f32 %v1270, %v1288
        %v1290 = vpop.f32.mrf.mxu0
        %v1291 = vadd.f32 %v1272, %v1290
        %1292 = vdwg.mxu0
        %vm1293 = vcmp.gt.f32.partialorder %v1151, 0.0
        %vm1294 = vcmp.gt.f32.partialorder %v1284, 0.0
        %vm1295 = vcmp.gt.f32.partialorder %v1153, 0.0
        %vm1296 = vcmp.gt.f32.partialorder %v1286, 0.0
        %vm1297 = vcmp.gt.f32.partialorder %v1156, 0.0
        %vm1298 = vcmp.gt.f32.partialorder %v1289, 0.0
        %vm1299 = vcmp.gt.f32.partialorder %v1158, 0.0
        %vm1300 = vcmp.gt.f32.partialorder %v1291, 0.0
        %v1301 = vmul.f32 %v1151, 0.2
        %v1302 = vmul.f32 %v1284, 0.2
        %v1303 = vmul.f32 %v1153, 0.2
        %v1304 = vmul.f32 %v1286, 0.2
        %v1305 = vmul.f32 %v1156, 0.2
        %v1306 = vmul.f32 %v1289, 0.2
        %v1307 = vmul.f32 %v1158, 0.2
        %v1308 = vmul.f32 %v1291, 0.2
        %v1309 = vsel %vm1293, %v1151, %v1301
        %v1310 = vsel %vm1294, %v1284, %v1302
        %v1311 = vsel %vm1295, %v1153, %v1303
        %v1312 = vsel %vm1296, %v1286, %v1304
        %v1313 = vsel %vm1297, %v1156, %v1305
        %v1314 = vsel %vm1298, %v1289, %v1306
        %v1315 = vsel %vm1299, %v1158, %v1307
        %v1316 = vsel %vm1300, %v1291, %v1308
        %v1317 = vpack.c.bf16 %v1311, %v1309
        %v1318 = vpack.c.bf16 %v1312, %v1310
        %v1319 = vpack.c.bf16 %v1315, %v1313
        %v1320 = vpack.c.bf16 %v1316, %v1314
        %v1321 = vld [vmem:[#allocation7] sm:$0xff]
        %v1322 = vld [vmem:[#allocation7 + $0x8] sm:$0xff]
        %v1323 = vld [vmem:[#allocation7 + $0x10] sm:$0xff]
        %v1324 = vld [vmem:[#allocation7 + $0x18] sm:$0xff]
        %v1325 = vld [vmem:[#allocation7 + $0x20] sm:$0xff]
        %v1326 = vld [vmem:[#allocation7 + $0x28] sm:$0xff]
        %v1327 = vld [vmem:[#allocation7 + $0x30] sm:$0xff]
        %v1328 = vld [vmem:[#allocation7 + $0x38] sm:$0xff]
        %v1329 = vld [vmem:[#allocation7 + $0x40] sm:$0xff]
        %v1330 = vld [vmem:[#allocation7 + $0x48] sm:$0xff]
        %v1331 = vld [vmem:[#allocation7 + $0x50] sm:$0xff]
        %v1332 = vld [vmem:[#allocation7 + $0x58] sm:$0xff]
        %v1333 = vld [vmem:[#allocation7 + $0x60] sm:$0xff]
        %v1334 = vld [vmem:[#allocation7 + $0x68] sm:$0xff]
        %v1335 = vld [vmem:[#allocation7 + $0x70] sm:$0xff]
        %v1336 = vld [vmem:[#allocation7 + $0x78] sm:$0xff]
        %v1337 = vld [vmem:[#allocation7 + $0x80] sm:$0xff]
        %v1338 = vld [vmem:[#allocation7 + $0x88] sm:$0xff]
        %v1339 = vld [vmem:[#allocation7 + $0x90] sm:$0xff]
        %v1340 = vld [vmem:[#allocation7 + $0x98] sm:$0xff]
        %v1341 = vld [vmem:[#allocation7 + $0xa0] sm:$0xff]
        %v1342 = vld [vmem:[#allocation7 + $0xa8] sm:$0xff]
        %v1343 = vld [vmem:[#allocation7 + $0xb0] sm:$0xff]
        %v1344 = vld [vmem:[#allocation7 + $0xb8] sm:$0xff]
        %v1345 = vld [vmem:[#allocation7 + $0xc0] sm:$0xff]
        %v1346 = vld [vmem:[#allocation7 + $0xc8] sm:$0xff]
        %v1347 = vld [vmem:[#allocation7 + $0xd0] sm:$0xff]
        %v1348 = vld [vmem:[#allocation7 + $0xd8] sm:$0xff]
        %v1349 = vld [vmem:[#allocation7 + $0xe0] sm:$0xff]
        %v1350 = vld [vmem:[#allocation7 + $0xe8] sm:$0xff]
        %v1351 = vld [vmem:[#allocation7 + $0xf0] sm:$0xff]
        %v1352 = vld [vmem:[#allocation7 + $0xf8] sm:$0xff]
        %v1353 = vld [vmem:[%s4] sm:$0x3]
        %v1355 = vperm.slane %v1353, 0
        %v1356 = vperm.slane %v1353, 1
        %v1391 = vunpack.c.l.b16 %v1321
        %v1392 = vunpack.c.h.b16 %v1321
        %v1393 = vunpack.c.l.b16 %v1322
        %v1394 = vunpack.c.h.b16 %v1322
        %v1395 = vunpack.c.l.b16 %v1323
        %v1396 = vunpack.c.h.b16 %v1323
        %v1397 = vunpack.c.l.b16 %v1324
        %v1398 = vunpack.c.h.b16 %v1324
        %v1399 = vunpack.c.l.b16 %v1325
        %v1400 = vunpack.c.h.b16 %v1325
        %v1401 = vunpack.c.l.b16 %v1326
        %v1402 = vunpack.c.h.b16 %v1326
        %v1403 = vunpack.c.l.b16 %v1327
        %v1404 = vunpack.c.h.b16 %v1327
        %v1405 = vunpack.c.l.b16 %v1328
        %v1406 = vunpack.c.h.b16 %v1328
        %v1407 = vunpack.c.l.b16 %v1329
        %v1408 = vunpack.c.h.b16 %v1329
        %v1409 = vunpack.c.l.b16 %v1330
        %v1410 = vunpack.c.h.b16 %v1330
        %v1411 = vunpack.c.l.b16 %v1331
        %v1412 = vunpack.c.h.b16 %v1331
        %v1413 = vunpack.c.l.b16 %v1332
        %v1414 = vunpack.c.h.b16 %v1332
        %v1415 = vunpack.c.l.b16 %v1333
        %v1416 = vunpack.c.h.b16 %v1333
        %v1417 = vunpack.c.l.b16 %v1334
        %v1418 = vunpack.c.h.b16 %v1334
        %v1419 = vunpack.c.l.b16 %v1335
        %v1420 = vunpack.c.h.b16 %v1335
        %v1421 = vunpack.c.l.b16 %v1336
        %v1422 = vunpack.c.h.b16 %v1336
        %v1423 = vunpack.c.l.b16 %v1337
        %v1424 = vunpack.c.h.b16 %v1337
        %v1425 = vunpack.c.l.b16 %v1338
        %v1426 = vunpack.c.h.b16 %v1338
        %v1427 = vunpack.c.l.b16 %v1339
        %v1428 = vunpack.c.h.b16 %v1339
        %v1429 = vunpack.c.l.b16 %v1340
        %v1430 = vunpack.c.h.b16 %v1340
        %v1431 = vunpack.c.l.b16 %v1341
        %v1432 = vunpack.c.h.b16 %v1341
        %v1433 = vunpack.c.l.b16 %v1342
        %v1434 = vunpack.c.h.b16 %v1342
        %v1435 = vunpack.c.l.b16 %v1343
        %v1436 = vunpack.c.h.b16 %v1343
        %v1437 = vunpack.c.l.b16 %v1344
        %v1438 = vunpack.c.h.b16 %v1344
        %v1439 = vunpack.c.l.b16 %v1345
        %v1440 = vunpack.c.h.b16 %v1345
        %v1441 = vunpack.c.l.b16 %v1346
        %v1442 = vunpack.c.h.b16 %v1346
        %v1443 = vunpack.c.l.b16 %v1347
        %v1444 = vunpack.c.h.b16 %v1347
        %v1445 = vunpack.c.l.b16 %v1348
        %v1446 = vunpack.c.h.b16 %v1348
        %v1447 = vunpack.c.l.b16 %v1349
        %v1448 = vunpack.c.h.b16 %v1349
        %v1449 = vunpack.c.l.b16 %v1350
        %v1450 = vunpack.c.h.b16 %v1350
        %v1451 = vunpack.c.l.b16 %v1351
        %v1452 = vunpack.c.h.b16 %v1351
        %v1453 = vunpack.c.l.b16 %v1352
        %v1454 = vunpack.c.h.b16 %v1352
        %v1455 = vpack.c.b16 %v1393, %v1391
        %v1456 = vpack.c.b16 %v1394, %v1392
        %v1457 = vpack.c.b16 %v1397, %v1395
        %v1458 = vpack.c.b16 %v1398, %v1396
        %v1459 = vpack.c.b16 %v1401, %v1399
        %v1460 = vpack.c.b16 %v1402, %v1400
        %v1461 = vpack.c.b16 %v1405, %v1403
        %v1462 = vpack.c.b16 %v1406, %v1404
        %v1463 = vpack.c.b16 %v1409, %v1407
        %v1464 = vpack.c.b16 %v1410, %v1408
        %v1465 = vpack.c.b16 %v1413, %v1411
        %v1466 = vpack.c.b16 %v1414, %v1412
        %v1467 = vpack.c.b16 %v1417, %v1415
        %v1468 = vpack.c.b16 %v1418, %v1416
        %v1469 = vpack.c.b16 %v1421, %v1419
        %v1470 = vpack.c.b16 %v1422, %v1420
        %v1471 = vpack.c.b16 %v1425, %v1423
        %v1472 = vpack.c.b16 %v1426, %v1424
        %v1473 = vpack.c.b16 %v1429, %v1427
        %v1474 = vpack.c.b16 %v1430, %v1428
        %v1475 = vpack.c.b16 %v1433, %v1431
        %v1476 = vpack.c.b16 %v1434, %v1432
        %v1477 = vpack.c.b16 %v1437, %v1435
        %v1478 = vpack.c.b16 %v1438, %v1436
        %v1479 = vpack.c.b16 %v1441, %v1439
        %v1480 = vpack.c.b16 %v1442, %v1440
        %v1481 = vpack.c.b16 %v1445, %v1443
        %v1482 = vpack.c.b16 %v1446, %v1444
        %v1483 = vpack.c.b16 %v1449, %v1447
        %v1484 = vpack.c.b16 %v1450, %v1448
        %v1485 = vpack.c.b16 %v1453, %v1451
        %v1486 = vpack.c.b16 %v1454, %v1452
        %1519 = vmatpush.bf16.msra.mxu0 %v1469
        %1520 = vmatpush.bf16.msra.mxu0 %v1467
        %1521 = vmatpush.bf16.msra.mxu0 %v1465
        %1522 = vmatpush.bf16.msra.mxu0 %v1463
        %1523 = vmatpush.bf16.msra.mxu0 %v1461
        %1524 = vmatpush.bf16.msra.mxu0 %v1459
        %1525 = vmatpush.bf16.msra.mxu0 %v1457
        %1526 = vmatpush.bf16.msra.mxu0 %v1455
        %1527 = vmatmul.bf16.gmra.mxu0 %v1317
        %v1528 = vpop.f32.mrf.mxu0
        %v1529 = vadd.f32 %v1355, %v1528
        %v1530 = vpop.f32.mrf.mxu0
        %v1531 = vadd.f32 %v1355, %v1530
        %1532 = vmatmul.bf16.gmra.mxu0 %v1319
        %v1533 = vpop.f32.mrf.mxu0
        %v1534 = vadd.f32 %v1355, %v1533
        %v1535 = vpop.f32.mrf.mxu0
        %v1536 = vadd.f32 %v1355, %v1535
        %1537 = vdwg.mxu0
        %1538 = vmatpush.bf16.msra.mxu0 %v1485
        %1539 = vmatpush.bf16.msra.mxu0 %v1483
        %1540 = vmatpush.bf16.msra.mxu0 %v1481
        %1541 = vmatpush.bf16.msra.mxu0 %v1479
        %1542 = vmatpush.bf16.msra.mxu0 %v1477
        %1543 = vmatpush.bf16.msra.mxu0 %v1475
        %1544 = vmatpush.bf16.msra.mxu0 %v1473
        %1545 = vmatpush.bf16.msra.mxu0 %v1471
        %1546 = vmatmul.bf16.gmra.mxu0 %v1318
        %v1547 = vpop.f32.mrf.mxu0
        %v1548 = vadd.f32 %v1529, %v1547
        %v1549 = vpop.f32.mrf.mxu0
        %v1550 = vadd.f32 %v1531, %v1549
        %1551 = vmatmul.bf16.gmra.mxu0 %v1320
        %v1552 = vpop.f32.mrf.mxu0
        %v1553 = vadd.f32 %v1534, %v1552
        %v1554 = vpop.f32.mrf.mxu0
        %v1555 = vadd.f32 %v1536, %v1554
        %1556 = vdwg.mxu0
        %1557 = vmatpush.bf16.msra.mxu0 %v1470
        %1558 = vmatpush.bf16.msra.mxu0 %v1468
        %1559 = vmatpush.bf16.msra.mxu0 %v1466
        %1560 = vmatpush.bf16.msra.mxu0 %v1464
        %1561 = vmatpush.bf16.msra.mxu0 %v1462
        %1562 = vmatpush.bf16.msra.mxu0 %v1460
        %1563 = vmatpush.bf16.msra.mxu0 %v1458
        %1564 = vmatpush.bf16.msra.mxu0 %v1456
        %1565 = vmatmul.bf16.gmra.mxu0 %v1317
        %v1566 = vpop.f32.mrf.mxu0
        %v1567 = vadd.f32 %v1356, %v1566
        %v1568 = vpop.f32.mrf.mxu0
        %v1569 = vadd.f32 %v1356, %v1568
        %1570 = vmatmul.bf16.gmra.mxu0 %v1319
        %v1571 = vpop.f32.mrf.mxu0
        %v1572 = vadd.f32 %v1356, %v1571
        %v1573 = vpop.f32.mrf.mxu0
        %v1574 = vadd.f32 %v1356, %v1573
        %1575 = vdwg.mxu0
        %1576 = vmatpush.bf16.msra.mxu0 %v1486
        %1577 = vmatpush.bf16.msra.mxu0 %v1484
        %1578 = vmatpush.bf16.msra.mxu0 %v1482
        %1579 = vmatpush.bf16.msra.mxu0 %v1480
        %1580 = vmatpush.bf16.msra.mxu0 %v1478
        %1581 = vmatpush.bf16.msra.mxu0 %v1476
        %1582 = vmatpush.bf16.msra.mxu0 %v1474
        %1583 = vmatpush.bf16.msra.mxu0 %v1472
        %1584 = vmatmul.bf16.gmra.mxu0 %v1318
        %v1585 = vpop.f32.mrf.mxu0
        %v1586 = vadd.f32 %v1567, %v1585
        %v1587 = vpop.f32.mrf.mxu0
        %v1588 = vadd.f32 %v1569, %v1587
        %1589 = vmatmul.bf16.gmra.mxu0 %v1320
        %v1590 = vpop.f32.mrf.mxu0
        %v1591 = vadd.f32 %v1572, %v1590
        %v1592 = vpop.f32.mrf.mxu0
        %v1593 = vadd.f32 %v1574, %v1592
        %1594 = vdwg.mxu0
        %vm1595 = vcmp.gt.f32.partialorder %v1548, 0.0
        %vm1596 = vcmp.gt.f32.partialorder %v1586, 0.0
        %vm1597 = vcmp.gt.f32.partialorder %v1550, 0.0
        %vm1598 = vcmp.gt.f32.partialorder %v1588, 0.0
        %vm1599 = vcmp.gt.f32.partialorder %v1553, 0.0
        %vm1600 = vcmp.gt.f32.partialorder %v1591, 0.0
        %vm1601 = vcmp.gt.f32.partialorder %v1555, 0.0
        %vm1602 = vcmp.gt.f32.partialorder %v1593, 0.0
        %v1603 = vmul.f32 %v1548, 0.2
        %v1604 = vmul.f32 %v1586, 0.2
        %v1605 = vmul.f32 %v1550, 0.2
        %v1606 = vmul.f32 %v1588, 0.2
        %v1607 = vmul.f32 %v1553, 0.2
        %v1608 = vmul.f32 %v1591, 0.2
        %v1609 = vmul.f32 %v1555, 0.2
        %v1610 = vmul.f32 %v1593, 0.2
        %v1611 = vsel %vm1595, %v1548, %v1603
        %v1612 = vsel %vm1596, %v1586, %v1604
        %v1613 = vsel %vm1597, %v1550, %v1605
        %v1614 = vsel %vm1598, %v1588, %v1606
        %v1615 = vsel %vm1599, %v1553, %v1607
        %v1616 = vsel %vm1600, %v1591, %v1608
        %v1617 = vsel %vm1601, %v1555, %v1609
        %v1618 = vsel %vm1602, %v1593, %v1610
        %v1619 = vld [vmem:[%s5] sm:$0x3]
        %v1621 = vperm.slane %v1619, 0
        %v1622 = vperm.slane %v1619, 1
        %v1625 = vmul.f32 %v1611, %v1621
        %v1626 = vmul.f32 %v1612, %v1622
        %v1627 = vmul.f32 %v1613, %v1621
        %v1628 = vmul.f32 %v1614, %v1622
        %v1629 = vmul.f32 %v1615, %v1621
        %v1630 = vmul.f32 %v1616, %v1622
        %v1631 = vmul.f32 %v1617, %v1621
        %v1632 = vmul.f32 %v1618, %v1622
        %v1633 = vadd.f32 %v1625, %v1626
        %1634 = vadd.xlane.f32.xlu0 %v1633
        %v1635 = vpop.xlane.xlu0 %1634
        %v1636 = vadd.f32 %v1627, %v1628
        %1637 = vadd.xlane.f32.xlu0 %v1636
        %v1638 = vpop.xlane.xlu0 %1637
        %v1639 = vadd.f32 %v1629, %v1630
        %1640 = vadd.xlane.f32.xlu0 %v1639
        %v1641 = vpop.xlane.xlu0 %1640
        %v1642 = vadd.f32 %v1631, %v1632
        %1643 = vadd.xlane.f32.xlu0 %v1642
        %v1644 = vpop.xlane.xlu0 %1643
        %v1645 = vld [vmem:[#allocation2] sm:$0x1]
        %v1647 = vperm.slane %v1645, 0
        %v1649 = vadd.f32 %v1635, %v1647
        %v1650 = vadd.f32 %v1638, %v1647
        %v1651 = vadd.f32 %v1641, %v1647
        %v1652 = vadd.f32 %v1644, %v1647
        %vm1653 = vcmask 7168
        %1654 = vst.msk [vmem:[%s337] sm:$0xff] %vm1653, %v1649
        %1655 = vst.msk [vmem:[%s337 + $0x8] sm:$0xff] %vm1653, %v1650
        %1656 = vst.msk [vmem:[%s337 + $0x10] sm:$0xff] %vm1653, %v1651
        %1657 = vst.msk [vmem:[%s337 + $0x18] sm:$0xff] %vm1653, %v1652
        %s1658 = smul.u32 4, %s24
        %p1659 = scmp.lt.s32.totalorder %s1658, 7
        %s1660 = scalar_select %p1659, %s1658, 7
        %s1661 = smul.addr %s1660, 8
        %s1662 = scalar_lea.vmem %s7, %s1661
        // Predicated region
        $region61: #{tpu_custom_call.1} parent=47 // pred_check
          %p1663 = pneg %p194
        $region62: #{tpu_custom_call.1} parent=47 // pred_check_branch
          %1665 = sbr.rel (%p1663) target = $region64
        $region63: #{tpu_custom_call.1} parent=47 // pred_region
          %s1666 = smul.u32 4, %s24
        $region64: #{tpu_custom_call.1} parent=47 // pred_fallthru
          _
      $region48: #{tpu_custom_call.1} parent=5 // pred_fallthru
        _
      %p1667 = scmp.le.s32.totalorder 2, %s19
      // Predicated region
      $region65: #{tpu_custom_call.1} parent=5 // pred_check
        %p1668 = pneg %p1667
      $region66: #{tpu_custom_call.1} parent=5 // pred_check_branch
        %1670 = sbr.rel (%p1668) target = $region68
      $region67: #{tpu_custom_call.1} parent=5 // pred_region
        %s1671 = ssub.s32 %s19, 2
        // Predicated region
        $region69: #{tpu_custom_call.1} parent=67 // pred_check
          %p1672 = pneg %p200
        $region70: #{tpu_custom_call.1} parent=67 // pred_check_branch
          %1674 = sbr.rel (%p1672) target = $region72
        $region71: #{tpu_custom_call.1} parent=67 // pred_region
          %s1675 = smul.u32 4, %s25
          %p1676 = scmp.lt.s32.totalorder %s1675, 7
          %s1677 = scalar_select %p1676, %s1675, 7
          %s1678 = smul.addr %s1677, 8
          %s1679 = scalar_lea.vmem %s7, %s1678
        $region72: #{tpu_custom_call.1} parent=67 // pred_fallthru
          _
      $region68: #{tpu_custom_call.1} parent=5 // pred_fallthru
        _
    $region6: #{tpu_custom_call.1} parent=1 // loop_footer
      %s23 = sadd.s32 1, %s19
    $region7: #{tpu_custom_call.1} parent=1 // loop_footer_branch
      %18 = sbr.rel target = $region3
    $region8: #{tpu_custom_call.1} parent=1 // loop_exit
      _
    %1680 = vsyncpa [#allocation4], 1
    %s1681 = scalar_lea.sflag [#allocation4], 1
    %1682 = vsyncpa %s1681, 1
    %1683 = vsyncpa [#allocation6], 1

</llo_original>
